<compile_context>
chip_gen: v7x
topology: tpu7x:2x2x1
jax: 0.10.0
libtpu: 0.0.40
codegen_flags: <defaults>
</compile_context>

<pallas_src>
import math
from functools import partial

import jax
import jax.numpy as jnp
from jax import lax
from jax.experimental import pallas as pl
from jax.experimental.pallas import tpu as pltpu


# ---------------------------------------------------------------------------
# Deterministic gaussian orthogonal random matrix (parameter init, plain JAX)
# ---------------------------------------------------------------------------
def gaussian_orthogonal_random_matrix(key, nb_rows, nb_columns, scaling=0):
    nb_full_blocks = nb_rows // nb_columns
    keys = jax.random.split(key, nb_full_blocks + 2)

    blocks = []
    for i in range(nb_full_blocks):
        unstructured = jax.random.normal(keys[i], (nb_columns, nb_columns),
                                         dtype=jnp.float32)
        q, _ = jnp.linalg.qr(unstructured)
        blocks.append(q.T)

    remaining_rows = nb_rows - nb_full_blocks * nb_columns
    if remaining_rows > 0:
        unstructured = jax.random.normal(keys[nb_full_blocks],
                                         (nb_columns, nb_columns),
                                         dtype=jnp.float32)
        q, _ = jnp.linalg.qr(unstructured)
        blocks.append(q.T[:remaining_rows])

    final_matrix = jnp.concatenate(blocks, axis=0)

    if scaling == 0:
        multiplier = jnp.linalg.norm(
            jax.random.normal(keys[-1], (nb_rows, nb_columns), dtype=jnp.float32),
            axis=1)
    elif scaling == 1:
        multiplier = math.sqrt(float(nb_columns)) * jnp.ones((nb_rows,),
                                                             dtype=jnp.float32)
    else:
        raise ValueError(f"Invalid scaling {scaling}")

    return jnp.diag(multiplier) @ final_matrix


# ---------------------------------------------------------------------------
# Pallas kernel: Performer fast attention for a group of G heads.
# Grid = (num_groups, 2*nt): for each group, nt KV steps then nt Q steps.
#   q_ref, k_ref : (G, T, Dh) bf16      v_ref : (G, T, E) bf16
#   proj_ref     : (Dh, M)    bf16      (pre-transposed, pre-scaled Dh**-0.25)
#   o_ref        : (1, T, G*E) bf16     (heads folded along the lane dim)
#   ctx_sc       : (G, M, E+1) f32      exp-part of k'^T [v | 1]
#   vsum_sc      : (G, 1, E+1) f32      column sums of [v | 1]  (eps part)
#   m_sc         : (G, 1, 1)   f32      running k-side max per head
# ---------------------------------------------------------------------------
def _fast_attention_kernel(q_ref, k_ref, v_ref, proj_ref, o_ref,
                           ctx_sc, vsum_sc, m_sc, *, nt, eps=1e-4):
    G, T, Dh = q_ref.shape
    E = v_ref.shape[2]
    M = proj_ref.shape[1]
    half_norm2 = 0.5 / math.sqrt(float(Dh))   # 0.5 * data_normalizer**2

    j = pl.program_id(1)
    proj_bf = proj_ref[...]                   # (Dh, M) bf16, grid-invariant

    @pl.when(j == 0)
    def _init():
        ctx_sc[...] = jnp.zeros_like(ctx_sc)
        vsum_sc[...] = jnp.zeros_like(vsum_sc)
        m_sc[...] = jnp.full_like(m_sc, -jnp.inf)

    # ---------------- KV phase: accumulate context with online max ---------
    @pl.when(j < nt)
    def _kv_phase():
        kf = k_ref[...].reshape(G * T, Dh)                          # bf16
        k_dash = jnp.dot(kf, proj_bf,
                         preferred_element_type=jnp.float32)        # (G*T, M)
        kf32 = kf.astype(jnp.float32)
        k_diag = jnp.sum(kf32 * kf32, axis=-1, keepdims=True) * half_norm2
        s = k_dash - k_diag                                         # (G*T, M)

        ones_col = jnp.ones((G, T, 1), dtype=jnp.bfloat16)          # hoisted
        v_aug_all = jnp.concatenate([v_ref[...], ones_col], axis=-1)  # (G,T,E+1)

        for g in range(G):                                          # static unroll
            s_g = s[g * T:(g + 1) * T]                              # (T, M)
            m_old = m_sc[g]                                         # (1, 1)
            m_new = jnp.maximum(m_old, jnp.max(s_g, keepdims=True))
            alpha = jnp.exp(m_old - m_new)                          # (1, 1)
            p_g = jnp.exp(s_g - m_new).astype(jnp.bfloat16)         # (T, M)
            # ctx += p_g^T @ [v | 1]  (contract T axis of both, no explicit .T)
            ctx_upd = lax.dot_general(
                p_g, v_aug_all[g],
                dimension_numbers=(((0,), (0,)), ((), ())),
                preferred_element_type=jnp.float32)                 # (M, E+1)
            ctx_sc[g] = ctx_sc[g] * alpha + ctx_upd
            vsum_sc[g] = vsum_sc[g] + jnp.sum(
                v_aug_all[g].astype(jnp.float32), axis=0, keepdims=True)
            m_sc[g] = m_new

    # ---------------- finalize: add the eps part of k' ---------------------
    @pl.when(j == nt)
    def _finalize_ctx():
        # k' = exp(s - k_max) + eps  =>  ctx = exp-part + eps * colsum([v | 1]).
        for g in range(G):
            ctx_sc[g] = ctx_sc[g] + eps * vsum_sc[g]

    # ---------------- Q phase: stream q tiles, emit output tiles -----------
    @pl.when(j >= nt)
    def _q_phase():
        qf = q_ref[...].reshape(G * T, Dh)                          # bf16
        q_dash = jnp.dot(qf, proj_bf,
                         preferred_element_type=jnp.float32)        # (G*T, M)
        qf32 = qf.astype(jnp.float32)
        q_diag = jnp.sum(qf32 * qf32, axis=-1, keepdims=True) * half_norm2
        q_max = jnp.max(q_dash, axis=-1, keepdims=True)             # per-row
        # NOTE: the reference `ratio = M**-0.5` scaling on q' and k' cancels
        # exactly between numerator and denominator, so it is dropped.
        q_prime = (jnp.exp(q_dash - (q_diag + q_max)) + eps
                   ).astype(jnp.bfloat16)                           # (G*T, M)

        outs = []
        for g in range(G):
            # TODO(synk): keep ctx in f32 for very long sequences.
            ctx_bf = ctx_sc[g].astype(jnp.bfloat16)                 # (M, E+1)
            out_aug = jnp.dot(q_prime[g * T:(g + 1) * T], ctx_bf,
                              preferred_element_type=jnp.float32)   # (T, E+1)
            d_inv = pl.reciprocal(out_aug[:, E:E + 1], approx=True)
            outs.append(out_aug[:, :E] * d_inv)                     # (T, E)

        # Fold heads along the lane dim -> lane-dense output block.
        o_ref[0] = jnp.concatenate(outs, axis=-1).astype(o_ref.dtype)


# ---------------------------------------------------------------------------
# Tiling / VMEM helpers
# ---------------------------------------------------------------------------
def _tpu_vmem_capacity_bytes():
    try:
        return int(pltpu.get_tpu_info().vmem_capacity_bytes)
    except Exception:
        return 64 * 1024 * 1024        # conservative (v7x per-core VMEM)


def _has_two_tensorcores():
    try:
        return "v7" in jax.devices()[0].device_kind.lower()
    except Exception:
        return False


def _vmem_footprint_bytes(G, T, Dh, E, M):
    bf16, f32 = 2, 4
    qkv = 2 * G * T * (2 * Dh + E) * bf16          # double-buffered bf16 q/k/v
    proj = 2 * Dh * M * bf16
    out = 2 * T * G * E * bf16
    scratch = G * M * 128 * f32 + 2 * G * 8 * 128 * f32   # padded scratch
    interm = G * T * M * 12                        # f32 dash + bf16 maps + slack
    return qkv + proj + out + scratch + interm


def _select_tiling(BH, N, Dh, E, M, vmem_budget, want_two_groups):
    """Largest head-group G (divisor of B*H) and seq tile T that fit VMEM."""
    if N <= 512:
        t_cands = [N]
    else:
        t_cands = [t for t in (512, 256, 128, 64, 32, 16, 8) if N % t == 0] or [N]
    g_cands = [g for g in range(BH, 0, -1) if BH % g == 0]
    for T in t_cands:
        for G in g_cands:
            if want_two_groups and BH >= 2 and BH // G < 2:
                continue               # keep >=2 groups only for 2-TC chips (v7x)
            if _vmem_footprint_bytes(G, T, Dh, E, M) <= vmem_budget:
                return G, T
    return 1, min(t_cands)


# ---------------------------------------------------------------------------
# Wrapper
# ---------------------------------------------------------------------------
def fast_attention_pallas(q, k, v, projection_matrix=None, *,
                          prepared_projection=None,
                          heads_per_block=None, seq_tile=None):
    B, H, N, Dh = q.shape
    E = v.shape[-1]
    BH = B * H

    if prepared_projection is None:
        assert projection_matrix is not None
        data_normalizer = float(Dh) ** (-0.25)
        prepared_projection = (projection_matrix.astype(jnp.float32).T
                               * data_normalizer).astype(jnp.bfloat16)
    M = prepared_projection.shape[1]

    vmem_cap = _tpu_vmem_capacity_bytes()
    G_sel, T_sel = _select_tiling(BH, N, Dh, E, M,
                                  vmem_budget=int(0.5 * vmem_cap),
                                  want_two_groups=_has_two_tensorcores())
    G = heads_per_block if heads_per_block is not None else G_sel
    T = seq_tile if seq_tile is not None else T_sel
    assert BH % G == 0, "heads_per_block must divide B*H"
    assert N % T == 0, "seq_tile must divide N"
    num_groups = BH // G
    nt = N // T

    # bf16 HBM I/O: MXU operands are bf16 anyway, f32 traffic is pure waste.
    q_r = q.reshape(BH, N, Dh).astype(jnp.bfloat16)
    k_r = k.reshape(BH, N, Dh).astype(jnp.bfloat16)
    v_r = v.reshape(BH, N, E).astype(jnp.bfloat16)

    grid_spec = pltpu.PrefetchScalarGridSpec(
        num_scalar_prefetch=0,
        grid=(num_groups, 2 * nt),     # axis 1: nt KV steps then nt Q steps
        in_specs=[
            # q pinned to tile 0 during the KV phase (no refetch), then streams.
            pl.BlockSpec((G, T, Dh), lambda i, j: (i, jnp.maximum(j - nt, 0), 0)),
            # k/v stream during the KV phase, pinned during the Q phase.
            pl.BlockSpec((G, T, Dh), lambda i, j: (i, jnp.minimum(j, nt - 1), 0)),
            pl.BlockSpec((G, T, E),  lambda i, j: (i, jnp.minimum(j, nt - 1), 0)),
            pl.BlockSpec((Dh, M),    lambda i, j: (0, 0)),
        ],
        out_specs=pl.BlockSpec((1, T, G * E),
                               lambda i, j: (i, jnp.maximum(j - nt, 0), 0)),
        scratch_shapes=[
            pltpu.VMEM((G, M, E + 1), jnp.float32),   # ctx exp-part accumulator
            pltpu.VMEM((G, 1, E + 1), jnp.float32),   # [v | 1] column sums
            pltpu.VMEM((G, 1, 1), jnp.float32),       # running k-side max
        ],
    )

    footprint = _vmem_footprint_bytes(G, T, Dh, E, M)
    vmem_limit = int(min(0.9 * vmem_cap,
                         max(32 * 1024 * 1024, 1.5 * footprint + (8 << 20))))

    flops = 4 * BH * N * M * Dh + 4 * BH * N * M * (E + 1)
    transcendentals = 2 * BH * N * M
    bytes_accessed = 2 * BH * N * (2 * Dh + 2 * E) + 2 * Dh * M

    out_folded = pl.pallas_call(
        partial(_fast_attention_kernel, nt=nt),
        out_shape=jax.ShapeDtypeStruct((num_groups, N, G * E), jnp.bfloat16),
        grid_spec=grid_spec,
        compiler_params=pltpu.CompilerParams(
            dimension_semantics=("parallel", "arbitrary"),
            vmem_limit_bytes=vmem_limit),
        cost_estimate=pl.CostEstimate(
            flops=flops, transcendentals=transcendentals,
            bytes_accessed=bytes_accessed),
    )(q_r, k_r, v_r, prepared_projection)

    # Un-fold heads (layout plumbing only).
    out = out_folded.reshape(num_groups, N, G, E)
    out = jnp.transpose(out, (0, 2, 1, 3)).reshape(B, H, N, E)
    return out


# ---------------------------------------------------------------------------
# Pure-JAX reference (mirrors the PyTorch math, f32) for verification
# ---------------------------------------------------------------------------
def _softmax_kernel_ref(data, projection_matrix, is_query, eps=1e-4):
    d = data.shape[-1]
    data_normalizer = d ** (-0.25)
    ratio = projection_matrix.shape[0] ** (-0.5)
    data_dash = jnp.einsum('bhid,jd->bhij', data_normalizer * data,
                           projection_matrix)
    diag_data = jnp.sum(data ** 2, axis=-1) / 2.0 * data_normalizer ** 2
    diag_data = diag_data[..., None]
    if is_query:
        m = jnp.max(data_dash, axis=-1, keepdims=True)
    else:
        m = jnp.max(data_dash, axis=(-1, -2), keepdims=True)
    return ratio * (jnp.exp(data_dash - diag_data - m) + eps)


def _linear_attention_ref(q, k, v):
    k_cumsum = jnp.sum(k, axis=-2)
    d_inv = 1.0 / jnp.einsum('...nd,...d->...n', q, k_cumsum)
    context = jnp.einsum('...nd,...ne->...de', k, v)
    return jnp.einsum('...de,...nd,...n->...ne', context, q, d_inv)


def fast_attention_ref(q, k, v, projection_matrix):
    qp = _softmax_kernel_ref(q, projection_matrix, is_query=True)
    kp = _softmax_kernel_ref(k, projection_matrix, is_query=False)
    return _linear_attention_ref(qp, kp, v)


# ---------------------------------------------------------------------------
# Thin Python analogue of ProjectionUpdater (state/bookkeeping only)
# ---------------------------------------------------------------------------
class ProjectionUpdater:
    """Holds the FastAttention projection matrix and redraw bookkeeping."""

    def __init__(self, dim_heads, nb_features, feature_redraw_interval,
                 freeze=False, key=jax.random.PRNGKey(42)):
        self.dim_heads = dim_heads
        self.nb_features = nb_features
        self.feature_redraw_interval = feature_redraw_interval
        self.freeze = freeze
        self.calls_since_last_redraw = 0
        self._key = key
        self._set_projection(gaussian_orthogonal_random_matrix(
            self._key, nb_features, dim_heads, scaling=0))

    def _set_projection(self, pm):
        # Pre-bake what the kernel wants: transposed, data_normalizer-scaled, bf16.
        self.projection_matrix = pm                              # (M, Dh) f32
        data_normalizer = float(self.dim_heads) ** (-0.25)
        self.prepared_projection = (pm.astype(jnp.float32).T
                                    * data_normalizer).astype(jnp.bfloat16)

    def redraw_projections(self, training=True):
        if self.freeze or not training:
            return
        if (self.feature_redraw_interval is not None
                and self.calls_since_last_redraw >= self.feature_redraw_interval):
            self._key, sub = jax.random.split(self._key)
            self._set_projection(gaussian_orthogonal_random_matrix(
                sub, self.nb_features, self.dim_heads, scaling=0))
            self.calls_since_last_redraw = 0
        self.calls_since_last_redraw += 1

    def __call__(self, q, k, v):
        # TODO(synk): reference ProjectionUpdater.forward raises NotImplemented;
        # we run the wrapped FastAttention forward (the actual compute) instead.
        return fast_attention_pallas(
            q, k, v, self.projection_matrix,
            prepared_projection=self.prepared_projection)


if __name__ == "__main__":
    B, H, N, Dh = 2, 2, 8, 16     # batch, heads, seq, head_dim
    NB_FEATURES = 32              # explicit nb_features (FastAttention arg)

    key = jax.random.PRNGKey(0)
    kq, kk, kv = jax.random.split(key, 3)
    q = jax.random.normal(kq, (B, H, N, Dh), dtype=jnp.float32)
    k = jax.random.normal(kk, (B, H, N, Dh), dtype=jnp.float32)
    v = jax.random.normal(kv, (B, H, N, Dh), dtype=jnp.float32)

    updater = ProjectionUpdater(dim_heads=Dh, nb_features=NB_FEATURES,
                                feature_redraw_interval=4)
    updater.redraw_projections(training=True)  # bookkeeping path

    out = updater(q, k, v)
    out = jax.block_until_ready(out)

    ref = fast_attention_ref(q, k, v, updater.projection_matrix)
    assert out.shape == (B, H, N, Dh)
    # bf16 HBM I/O + bf16 MXU operands (f32 accumulation) + approx reciprocal
    # loosen numerics vs. the pure-f32 reference; structural errors would be
    # O(0.5+) so this tolerance still catches real bugs.
    max_err = float(jnp.max(jnp.abs(out.astype(jnp.float32) - ref)))
    assert max_err < 2e-1, f"mismatch vs reference (max abs err {max_err})"

    print("KERNEL_OK")
</pallas_src>

<mosaic_0001>
module attributes {stable_mosaic.version = 11 : i64} {
  func.func @_fast_attention_kernel(%arg0: i32, %arg1: i32, %arg2: memref<4x8x16xbf16, #tpu.memory_space<vmem>>, %arg3: memref<4x8x16xbf16, #tpu.memory_space<vmem>>, %arg4: memref<4x8x16xbf16, #tpu.memory_space<vmem>>, %arg5: memref<16x32xbf16, #tpu.memory_space<vmem>>, %arg6: memref<1x8x64xbf16, #tpu.memory_space<vmem>>, %arg7: memref<4x32x17xf32, #tpu.memory_space<vmem>>, %arg8: memref<4x1x17xf32, #tpu.memory_space<vmem>>, %arg9: memref<4x1x1xf32, #tpu.memory_space<vmem>>) attributes {dimension_semantics = [#tpu.dimension_semantics<parallel>, #tpu.dimension_semantics<arbitrary>], iteration_bounds = array<i64: 1, 2>, scalar_prefetch = 0 : i64, scratch_operands = 3 : i64, tpu.core_type = #tpu.core_type<tc>, window_params = [{transform_indices = @transform_0, window_bounds = array<i64: 4, 8, 16>}, {transform_indices = @transform_1, window_bounds = array<i64: 4, 8, 16>}, {transform_indices = @transform_2, window_bounds = array<i64: 4, 8, 16>}, {pipeline_mode = #tpu.pipeline_mode<synchronous>, transform_indices = @transform_3, window_bounds = array<i64: 16, 32>}, {transform_indices = @transform_4, window_bounds = array<i64: 1, 8, 64>}]} {
    %c0 = arith.constant 0 : index
    %c0_0 = arith.constant 0 : index
    %0 = vector.load %arg5[%c0, %c0_0] : memref<16x32xbf16, #tpu.memory_space<vmem>>, vector<16x32xbf16>
    %c0_i32 = arith.constant 0 : i32
    %1 = arith.cmpi eq, %arg1, %c0_i32 : i32
    %2 = arith.extui %1 : i1 to i32
    %c0_i32_1 = arith.constant 0 : i32
    %3 = arith.cmpi ne, %2, %c0_i32_1 : i32
    scf.if %3 {
      %cst = arith.constant 0.000000e+00 : f32
      %13 = vector.broadcast %cst : f32 to vector<4x32x17xf32>
      %c0_7 = arith.constant 0 : index
      %c0_8 = arith.constant 0 : index
      %c0_9 = arith.constant 0 : index
      %14 = vector.load %arg7[%c0_7, %c0_8, %c0_9] : memref<4x32x17xf32, #tpu.memory_space<vmem>>, vector<4x32x17xf32>
      tpu.vector_store %arg7[%c0_7, %c0_8, %c0_9], %13 {strides = array<i32>} : memref<4x32x17xf32, #tpu.memory_space<vmem>>, vector<4x32x17xf32>,
      %cst_10 = arith.constant 0.000000e+00 : f32
      %15 = vector.broadcast %cst_10 : f32 to vector<4x1x17xf32>
      %c0_11 = arith.constant 0 : index
      %c0_12 = arith.constant 0 : index
      %c0_13 = arith.constant 0 : index
      %16 = vector.load %arg8[%c0_11, %c0_12, %c0_13] : memref<4x1x17xf32, #tpu.memory_space<vmem>>, vector<4x1x17xf32>
      tpu.vector_store %arg8[%c0_11, %c0_12, %c0_13], %15 {strides = array<i32>} : memref<4x1x17xf32, #tpu.memory_space<vmem>>, vector<4x1x17xf32>,
      %cst_14 = arith.constant 0xFF800000 : f32
      %17 = vector.broadcast %cst_14 : f32 to vector<4x1x1xf32>
      %c0_15 = arith.constant 0 : index
      %c0_16 = arith.constant 0 : index
      %c0_17 = arith.constant 0 : index
      %18 = vector.load %arg9[%c0_15, %c0_16, %c0_17] : memref<4x1x1xf32, #tpu.memory_space<vmem>>, vector<4x1x1xf32>
      tpu.vector_store %arg9[%c0_15, %c0_16, %c0_17], %17 {strides = array<i32>} : memref<4x1x1xf32, #tpu.memory_space<vmem>>, vector<4x1x1xf32>,
    } else {
    }
    %c1_i32 = arith.constant 1 : i32
    %4 = arith.cmpi slt, %arg1, %c1_i32 : i32
    %5 = arith.extui %4 : i1 to i32
    %c0_i32_2 = arith.constant 0 : i32
    %6 = arith.cmpi ne, %5, %c0_i32_2 : i32
    scf.if %6 {
      %c0_7 = arith.constant 0 : index
      %c0_8 = arith.constant 0 : index
      %c0_9 = arith.constant 0 : index
      %13 = vector.load %arg3[%c0_7, %c0_8, %c0_9] : memref<4x8x16xbf16, #tpu.memory_space<vmem>>, vector<4x8x16xbf16>
      %14 = vector.shape_cast %13 : vector<4x8x16xbf16> to vector<32x16xbf16>
      %cst = arith.constant dense<0.000000e+00> : vector<32x32xf32>
      %15 = tpu.matmul %14, %0, %cst {dimension_numbers = #tpu.dot_dimension_numbers<[1], [0], [0], [1], [0, 0, 1, 1], [], []>} : vector<32x16xbf16>, vector<16x32xbf16>, vector<32x32xf32> -> vector<32x32xf32>
      %16 = arith.extf %14 : vector<32x16xbf16> to vector<32x16xf32>
      %17 = arith.mulf %16, %16 : vector<32x16xf32>
      %cst_10 = arith.constant dense<0.000000e+00> : vector<32xf32>
      %18 = vector.multi_reduction <add>, %17, %cst_10 [1] : vector<32x16xf32> to vector<32xf32>
      %19 = vector.shape_cast %18 : vector<32xf32> to vector<32x1xf32>
      %cst_11 = arith.constant 1.250000e-01 : f32
      %20 = vector.broadcast %cst_11 : f32 to vector<32x1xf32>
      %21 = arith.mulf %19, %20 : vector<32x1xf32>
      %22 = vector.broadcast %21 : vector<32x1xf32> to vector<32x32xf32>
      %23 = arith.subf %15, %22 : vector<32x32xf32>
      %cst_12 = arith.constant 1.000000e+00 : bf16
      %24 = vector.broadcast %cst_12 : bf16 to vector<4x8x1xbf16>
      %c0_13 = arith.constant 0 : index
      %c0_14 = arith.constant 0 : index
      %c0_15 = arith.constant 0 : index
      %25 = vector.load %arg4[%c0_13, %c0_14, %c0_15] : memref<4x8x16xbf16, #tpu.memory_space<vmem>>, vector<4x8x16xbf16>
      %26 = tpu.concatenate %25, %24 in 2 : vector<4x8x16xbf16>, vector<4x8x1xbf16> -> vector<4x8x17xbf16>
      %27 = vector.extract_strided_slice %23 {offsets = [0, 0], sizes = [8, 32], strides = [1, 1]} : vector<32x32xf32> to vector<8x32xf32>
      %c0_16 = arith.constant 0 : index
      %c0_17 = arith.constant 0 : index
      %c0_18 = arith.constant 0 : index
      %28 = vector.load %arg9[%c0_16, %c0_17, %c0_18] : memref<4x1x1xf32, #tpu.memory_space<vmem>>, vector<1x1x1xf32>
      %29 = vector.shape_cast %28 : vector<1x1x1xf32> to vector<1x1xf32>
      %30 = vector.shape_cast %27 : vector<8x32xf32> to vector<1x8x32xf32>
      %cst_19 = arith.constant dense<0xFF800000> : vector<1xf32>
      %31 = vector.multi_reduction <maximumf>, %30, %cst_19 [1, 2] : vector<1x8x32xf32> to vector<1xf32>
      %32 = vector.shape_cast %31 : vector<1xf32> to vector<1x1x1xf32>
      %33 = vector.extract %32[0, 0, 0] : f32 from vector<1x1x1xf32>
      %34 = vector.broadcast %33 : f32 to vector<1x1xf32>
      %35 = arith.maximumf %29, %34 : vector<1x1xf32>
      %36 = arith.subf %29, %35 : vector<1x1xf32>
      %37 = math.exp %36 : vector<1x1xf32>
      %38 = vector.broadcast %35 : vector<1x1xf32> to vector<8x32xf32>
      %39 = arith.subf %27, %38 : vector<8x32xf32>
      %40 = math.exp %39 : vector<8x32xf32>
      %41 = arith.truncf %40 : vector<8x32xf32> to vector<8x32xbf16>
      %42 = vector.extract_strided_slice %26 {offsets = [0, 0, 0], sizes = [1, 8, 17], strides = [1, 1, 1]} : vector<4x8x17xbf16> to vector<1x8x17xbf16>
      %43 = vector.shape_cast %42 : vector<1x8x17xbf16> to vector<8x17xbf16>
      %cst_20 = arith.constant dense<0.000000e+00> : vector<32x17xf32>
      %44 = tpu.matmul %41, %43, %cst_20 {dimension_numbers = #tpu.dot_dimension_numbers<[0], [0], [1], [1], [0, 1, 1, 1], [], []>} : vector<8x32xbf16>, vector<8x17xbf16>, vector<32x17xf32> -> vector<32x17xf32>
      %c0_21 = arith.constant 0 : index
      %c0_22 = arith.constant 0 : index
      %c0_23 = arith.constant 0 : index
      %45 = vector.load %arg7[%c0_21, %c0_22, %c0_23] : memref<4x32x17xf32, #tpu.memory_space<vmem>>, vector<1x32x17xf32>
      %46 = vector.shape_cast %45 : vector<1x32x17xf32> to vector<32x17xf32>
      %47 = vector.broadcast %37 : vector<1x1xf32> to vector<32x17xf32>
      %48 = arith.mulf %46, %47 : vector<32x17xf32>
      %49 = arith.addf %48, %44 : vector<32x17xf32>
      %c0_24 = arith.constant 0 : index
      %c0_25 = arith.constant 0 : index
      %c0_26 = arith.constant 0 : index
      %50 = vector.load %arg7[%c0_24, %c0_25, %c0_26] : memref<4x32x17xf32, #tpu.memory_space<vmem>>, vector<1x32x17xf32>
      %51 = vector.shape_cast %50 : vector<1x32x17xf32> to vector<32x17xf32>
      %52 = vector.shape_cast %49 : vector<32x17xf32> to vector<1x32x17xf32>
      tpu.vector_store %arg7[%c0_24, %c0_25, %c0_26], %52 {strides = array<i32>} : memref<4x32x17xf32, #tpu.memory_space<vmem>>, vector<1x32x17xf32>,
      %c0_27 = arith.constant 0 : index
      %c0_28 = arith.constant 0 : index
      %c0_29 = arith.constant 0 : index
      %53 = vector.load %arg8[%c0_27, %c0_28, %c0_29] : memref<4x1x17xf32, #tpu.memory_space<vmem>>, vector<1x1x17xf32>
      %54 = vector.shape_cast %53 : vector<1x1x17xf32> to vector<1x17xf32>
      %55 = vector.extract_strided_slice %26 {offsets = [0, 0, 0], sizes = [1, 8, 17], strides = [1, 1, 1]} : vector<4x8x17xbf16> to vector<1x8x17xbf16>
      %56 = vector.shape_cast %55 : vector<1x8x17xbf16> to vector<8x17xbf16>
      %57 = arith.extf %56 : vector<8x17xbf16> to vector<8x17xf32>
      %cst_30 = arith.constant dense<0.000000e+00> : vector<17xf32>
      %58 = vector.multi_reduction <add>, %57, %cst_30 [0] : vector<8x17xf32> to vector<17xf32>
      %59 = vector.shape_cast %58 : vector<17xf32> to vector<1x17xf32>
      %60 = arith.addf %54, %59 : vector<1x17xf32>
      %c0_31 = arith.constant 0 : index
      %c0_32 = arith.constant 0 : index
      %c0_33 = arith.constant 0 : index
      %61 = vector.load %arg8[%c0_31, %c0_32, %c0_33] : memref<4x1x17xf32, #tpu.memory_space<vmem>>, vector<1x1x17xf32>
      %62 = vector.shape_cast %61 : vector<1x1x17xf32> to vector<1x17xf32>
      %63 = vector.shape_cast %60 : vector<1x17xf32> to vector<1x1x17xf32>
      tpu.vector_store %arg8[%c0_31, %c0_32, %c0_33], %63 {strides = array<i32>} : memref<4x1x17xf32, #tpu.memory_space<vmem>>, vector<1x1x17xf32>,
      %c0_34 = arith.constant 0 : index
      %c0_35 = arith.constant 0 : index
      %c0_36 = arith.constant 0 : index
      %64 = vector.load %arg9[%c0_34, %c0_35, %c0_36] : memref<4x1x1xf32, #tpu.memory_space<vmem>>, vector<1x1x1xf32>
      %65 = vector.shape_cast %64 : vector<1x1x1xf32> to vector<1x1xf32>
      %66 = vector.shape_cast %35 : vector<1x1xf32> to vector<1x1x1xf32>
      tpu.vector_store %arg9[%c0_34, %c0_35, %c0_36], %66 {strides = array<i32>} : memref<4x1x1xf32, #tpu.memory_space<vmem>>, vector<1x1x1xf32>,
      %67 = vector.extract_strided_slice %23 {offsets = [8, 0], sizes = [8, 32], strides = [1, 1]} : vector<32x32xf32> to vector<8x32xf32>
      %c1 = arith.constant 1 : index
      %c0_37 = arith.constant 0 : index
      %c0_38 = arith.constant 0 : index
      %68 = vector.load %arg9[%c1, %c0_37, %c0_38] : memref<4x1x1xf32, #tpu.memory_space<vmem>>, vector<1x1x1xf32>
      %69 = vector.shape_cast %68 : vector<1x1x1xf32> to vector<1x1xf32>
      %70 = vector.shape_cast %67 : vector<8x32xf32> to vector<1x8x32xf32>
      %cst_39 = arith.constant dense<0xFF800000> : vector<1xf32>
      %71 = vector.multi_reduction <maximumf>, %70, %cst_39 [1, 2] : vector<1x8x32xf32> to vector<1xf32>
      %72 = vector.shape_cast %71 : vector<1xf32> to vector<1x1x1xf32>
      %73 = vector.extract %72[0, 0, 0] : f32 from vector<1x1x1xf32>
      %74 = vector.broadcast %73 : f32 to vector<1x1xf32>
      %75 = arith.maximumf %69, %74 : vector<1x1xf32>
      %76 = arith.subf %69, %75 : vector<1x1xf32>
      %77 = math.exp %76 : vector<1x1xf32>
      %78 = vector.broadcast %75 : vector<1x1xf32> to vector<8x32xf32>
      %79 = arith.subf %67, %78 : vector<8x32xf32>
      %80 = math.exp %79 : vector<8x32xf32>
      %81 = arith.truncf %80 : vector<8x32xf32> to vector<8x32xbf16>
      %82 = vector.extract_strided_slice %26 {offsets = [1, 0, 0], sizes = [1, 8, 17], strides = [1, 1, 1]} : vector<4x8x17xbf16> to vector<1x8x17xbf16>
      %83 = vector.shape_cast %82 : vector<1x8x17xbf16> to vector<8x17xbf16>
      %cst_40 = arith.constant dense<0.000000e+00> : vector<32x17xf32>
      %84 = tpu.matmul %81, %83, %cst_40 {dimension_numbers = #tpu.dot_dimension_numbers<[0], [0], [1], [1], [0, 1, 1, 1], [], []>} : vector<8x32xbf16>, vector<8x17xbf16>, vector<32x17xf32> -> vector<32x17xf32>
      %c1_41 = arith.constant 1 : index
      %c0_42 = arith.constant 0 : index
      %c0_43 = arith.constant 0 : index
      %85 = vector.load %arg7[%c1_41, %c0_42, %c0_43] : memref<4x32x17xf32, #tpu.memory_space<vmem>>, vector<1x32x17xf32>
      %86 = vector.shape_cast %85 : vector<1x32x17xf32> to vector<32x17xf32>
      %87 = vector.broadcast %77 : vector<1x1xf32> to vector<32x17xf32>
      %88 = arith.mulf %86, %87 : vector<32x17xf32>
      %89 = arith.addf %88, %84 : vector<32x17xf32>
      %c1_44 = arith.constant 1 : index
      %c0_45 = arith.constant 0 : index
      %c0_46 = arith.constant 0 : index
      %90 = vector.load %arg7[%c1_44, %c0_45, %c0_46] : memref<4x32x17xf32, #tpu.memory_space<vmem>>, vector<1x32x17xf32>
      %91 = vector.shape_cast %90 : vector<1x32x17xf32> to vector<32x17xf32>
      %92 = vector.shape_cast %89 : vector<32x17xf32> to vector<1x32x17xf32>
      tpu.vector_store %arg7[%c1_44, %c0_45, %c0_46], %92 {strides = array<i32>} : memref<4x32x17xf32, #tpu.memory_space<vmem>>, vector<1x32x17xf32>,
      %c1_47 = arith.constant 1 : index
      %c0_48 = arith.constant 0 : index
      %c0_49 = arith.constant 0 : index
      %93 = vector.load %arg8[%c1_47, %c0_48, %c0_49] : memref<4x1x17xf32, #tpu.memory_space<vmem>>, vector<1x1x17xf32>
      %94 = vector.shape_cast %93 : vector<1x1x17xf32> to vector<1x17xf32>
      %95 = vector.extract_strided_slice %26 {offsets = [1, 0, 0], sizes = [1, 8, 17], strides = [1, 1, 1]} : vector<4x8x17xbf16> to vector<1x8x17xbf16>
      %96 = vector.shape_cast %95 : vector<1x8x17xbf16> to vector<8x17xbf16>
      %97 = arith.extf %96 : vector<8x17xbf16> to vector<8x17xf32>
      %cst_50 = arith.constant dense<0.000000e+00> : vector<17xf32>
      %98 = vector.multi_reduction <add>, %97, %cst_50 [0] : vector<8x17xf32> to vector<17xf32>
      %99 = vector.shape_cast %98 : vector<17xf32> to vector<1x17xf32>
      %100 = arith.addf %94, %99 : vector<1x17xf32>
      %c1_51 = arith.constant 1 : index
      %c0_52 = arith.constant 0 : index
      %c0_53 = arith.constant 0 : index
      %101 = vector.load %arg8[%c1_51, %c0_52, %c0_53] : memref<4x1x17xf32, #tpu.memory_space<vmem>>, vector<1x1x17xf32>
      %102 = vector.shape_cast %101 : vector<1x1x17xf32> to vector<1x17xf32>
      %103 = vector.shape_cast %100 : vector<1x17xf32> to vector<1x1x17xf32>
      tpu.vector_store %arg8[%c1_51, %c0_52, %c0_53], %103 {strides = array<i32>} : memref<4x1x17xf32, #tpu.memory_space<vmem>>, vector<1x1x17xf32>,
      %c1_54 = arith.constant 1 : index
      %c0_55 = arith.constant 0 : index
      %c0_56 = arith.constant 0 : index
      %104 = vector.load %arg9[%c1_54, %c0_55, %c0_56] : memref<4x1x1xf32, #tpu.memory_space<vmem>>, vector<1x1x1xf32>
      %105 = vector.shape_cast %104 : vector<1x1x1xf32> to vector<1x1xf32>
      %106 = vector.shape_cast %75 : vector<1x1xf32> to vector<1x1x1xf32>
      tpu.vector_store %arg9[%c1_54, %c0_55, %c0_56], %106 {strides = array<i32>} : memref<4x1x1xf32, #tpu.memory_space<vmem>>, vector<1x1x1xf32>,
      %107 = vector.extract_strided_slice %23 {offsets = [16, 0], sizes = [8, 32], strides = [1, 1]} : vector<32x32xf32> to vector<8x32xf32>
      %c2 = arith.constant 2 : index
      %c0_57 = arith.constant 0 : index
      %c0_58 = arith.constant 0 : index
      %108 = vector.load %arg9[%c2, %c0_57, %c0_58] : memref<4x1x1xf32, #tpu.memory_space<vmem>>, vector<1x1x1xf32>
      %109 = vector.shape_cast %108 : vector<1x1x1xf32> to vector<1x1xf32>
      %110 = vector.shape_cast %107 : vector<8x32xf32> to vector<1x8x32xf32>
      %cst_59 = arith.constant dense<0xFF800000> : vector<1xf32>
      %111 = vector.multi_reduction <maximumf>, %110, %cst_59 [1, 2] : vector<1x8x32xf32> to vector<1xf32>
      %112 = vector.shape_cast %111 : vector<1xf32> to vector<1x1x1xf32>
      %113 = vector.extract %112[0, 0, 0] : f32 from vector<1x1x1xf32>
      %114 = vector.broadcast %113 : f32 to vector<1x1xf32>
      %115 = arith.maximumf %109, %114 : vector<1x1xf32>
      %116 = arith.subf %109, %115 : vector<1x1xf32>
      %117 = math.exp %116 : vector<1x1xf32>
      %118 = vector.broadcast %115 : vector<1x1xf32> to vector<8x32xf32>
      %119 = arith.subf %107, %118 : vector<8x32xf32>
      %120 = math.exp %119 : vector<8x32xf32>
      %121 = arith.truncf %120 : vector<8x32xf32> to vector<8x32xbf16>
      %122 = vector.extract_strided_slice %26 {offsets = [2, 0, 0], sizes = [1, 8, 17], strides = [1, 1, 1]} : vector<4x8x17xbf16> to vector<1x8x17xbf16>
      %123 = vector.shape_cast %122 : vector<1x8x17xbf16> to vector<8x17xbf16>
      %cst_60 = arith.constant dense<0.000000e+00> : vector<32x17xf32>
      %124 = tpu.matmul %121, %123, %cst_60 {dimension_numbers = #tpu.dot_dimension_numbers<[0], [0], [1], [1], [0, 1, 1, 1], [], []>} : vector<8x32xbf16>, vector<8x17xbf16>, vector<32x17xf32> -> vector<32x17xf32>
      %c2_61 = arith.constant 2 : index
      %c0_62 = arith.constant 0 : index
      %c0_63 = arith.constant 0 : index
      %125 = vector.load %arg7[%c2_61, %c0_62, %c0_63] : memref<4x32x17xf32, #tpu.memory_space<vmem>>, vector<1x32x17xf32>
      %126 = vector.shape_cast %125 : vector<1x32x17xf32> to vector<32x17xf32>
      %127 = vector.broadcast %117 : vector<1x1xf32> to vector<32x17xf32>
      %128 = arith.mulf %126, %127 : vector<32x17xf32>
      %129 = arith.addf %128, %124 : vector<32x17xf32>
      %c2_64 = arith.constant 2 : index
      %c0_65 = arith.constant 0 : index
      %c0_66 = arith.constant 0 : index
      %130 = vector.load %arg7[%c2_64, %c0_65, %c0_66] : memref<4x32x17xf32, #tpu.memory_space<vmem>>, vector<1x32x17xf32>
      %131 = vector.shape_cast %130 : vector<1x32x17xf32> to vector<32x17xf32>
      %132 = vector.shape_cast %129 : vector<32x17xf32> to vector<1x32x17xf32>
      tpu.vector_store %arg7[%c2_64, %c0_65, %c0_66], %132 {strides = array<i32>} : memref<4x32x17xf32, #tpu.memory_space<vmem>>, vector<1x32x17xf32>,
      %c2_67 = arith.constant 2 : index
      %c0_68 = arith.constant 0 : index
      %c0_69 = arith.constant 0 : index
      %133 = vector.load %arg8[%c2_67, %c0_68, %c0_69] : memref<4x1x17xf32, #tpu.memory_space<vmem>>, vector<1x1x17xf32>
      %134 = vector.shape_cast %133 : vector<1x1x17xf32> to vector<1x17xf32>
      %135 = vector.extract_strided_slice %26 {offsets = [2, 0, 0], sizes = [1, 8, 17], strides = [1, 1, 1]} : vector<4x8x17xbf16> to vector<1x8x17xbf16>
      %136 = vector.shape_cast %135 : vector<1x8x17xbf16> to vector<8x17xbf16>
      %137 = arith.extf %136 : vector<8x17xbf16> to vector<8x17xf32>
      %cst_70 = arith.constant dense<0.000000e+00> : vector<17xf32>
      %138 = vector.multi_reduction <add>, %137, %cst_70 [0] : vector<8x17xf32> to vector<17xf32>
      %139 = vector.shape_cast %138 : vector<17xf32> to vector<1x17xf32>
      %140 = arith.addf %134, %139 : vector<1x17xf32>
      %c2_71 = arith.constant 2 : index
      %c0_72 = arith.constant 0 : index
      %c0_73 = arith.constant 0 : index
      %141 = vector.load %arg8[%c2_71, %c0_72, %c0_73] : memref<4x1x17xf32, #tpu.memory_space<vmem>>, vector<1x1x17xf32>
      %142 = vector.shape_cast %141 : vector<1x1x17xf32> to vector<1x17xf32>
      %143 = vector.shape_cast %140 : vector<1x17xf32> to vector<1x1x17xf32>
      tpu.vector_store %arg8[%c2_71, %c0_72, %c0_73], %143 {strides = array<i32>} : memref<4x1x17xf32, #tpu.memory_space<vmem>>, vector<1x1x17xf32>,
      %c2_74 = arith.constant 2 : index
      %c0_75 = arith.constant 0 : index
      %c0_76 = arith.constant 0 : index
      %144 = vector.load %arg9[%c2_74, %c0_75, %c0_76] : memref<4x1x1xf32, #tpu.memory_space<vmem>>, vector<1x1x1xf32>
      %145 = vector.shape_cast %144 : vector<1x1x1xf32> to vector<1x1xf32>
      %146 = vector.shape_cast %115 : vector<1x1xf32> to vector<1x1x1xf32>
      tpu.vector_store %arg9[%c2_74, %c0_75, %c0_76], %146 {strides = array<i32>} : memref<4x1x1xf32, #tpu.memory_space<vmem>>, vector<1x1x1xf32>,
      %147 = vector.extract_strided_slice %23 {offsets = [24, 0], sizes = [8, 32], strides = [1, 1]} : vector<32x32xf32> to vector<8x32xf32>
      %c3 = arith.constant 3 : index
      %c0_77 = arith.constant 0 : index
      %c0_78 = arith.constant 0 : index
      %148 = vector.load %arg9[%c3, %c0_77, %c0_78] : memref<4x1x1xf32, #tpu.memory_space<vmem>>, vector<1x1x1xf32>
      %149 = vector.shape_cast %148 : vector<1x1x1xf32> to vector<1x1xf32>
      %150 = vector.shape_cast %147 : vector<8x32xf32> to vector<1x8x32xf32>
      %cst_79 = arith.constant dense<0xFF800000> : vector<1xf32>
      %151 = vector.multi_reduction <maximumf>, %150, %cst_79 [1, 2] : vector<1x8x32xf32> to vector<1xf32>
      %152 = vector.shape_cast %151 : vector<1xf32> to vector<1x1x1xf32>
      %153 = vector.extract %152[0, 0, 0] : f32 from vector<1x1x1xf32>
      %154 = vector.broadcast %153 : f32 to vector<1x1xf32>
      %155 = arith.maximumf %149, %154 : vector<1x1xf32>
      %156 = arith.subf %149, %155 : vector<1x1xf32>
      %157 = math.exp %156 : vector<1x1xf32>
      %158 = vector.broadcast %155 : vector<1x1xf32> to vector<8x32xf32>
      %159 = arith.subf %147, %158 : vector<8x32xf32>
      %160 = math.exp %159 : vector<8x32xf32>
      %161 = arith.truncf %160 : vector<8x32xf32> to vector<8x32xbf16>
      %162 = vector.extract_strided_slice %26 {offsets = [3, 0, 0], sizes = [1, 8, 17], strides = [1, 1, 1]} : vector<4x8x17xbf16> to vector<1x8x17xbf16>
      %163 = vector.shape_cast %162 : vector<1x8x17xbf16> to vector<8x17xbf16>
      %cst_80 = arith.constant dense<0.000000e+00> : vector<32x17xf32>
      %164 = tpu.matmul %161, %163, %cst_80 {dimension_numbers = #tpu.dot_dimension_numbers<[0], [0], [1], [1], [0, 1, 1, 1], [], []>} : vector<8x32xbf16>, vector<8x17xbf16>, vector<32x17xf32> -> vector<32x17xf32>
      %c3_81 = arith.constant 3 : index
      %c0_82 = arith.constant 0 : index
      %c0_83 = arith.constant 0 : index
      %165 = vector.load %arg7[%c3_81, %c0_82, %c0_83] : memref<4x32x17xf32, #tpu.memory_space<vmem>>, vector<1x32x17xf32>
      %166 = vector.shape_cast %165 : vector<1x32x17xf32> to vector<32x17xf32>
      %167 = vector.broadcast %157 : vector<1x1xf32> to vector<32x17xf32>
      %168 = arith.mulf %166, %167 : vector<32x17xf32>
      %169 = arith.addf %168, %164 : vector<32x17xf32>
      %c3_84 = arith.constant 3 : index
      %c0_85 = arith.constant 0 : index
      %c0_86 = arith.constant 0 : index
      %170 = vector.load %arg7[%c3_84, %c0_85, %c0_86] : memref<4x32x17xf32, #tpu.memory_space<vmem>>, vector<1x32x17xf32>
      %171 = vector.shape_cast %170 : vector<1x32x17xf32> to vector<32x17xf32>
      %172 = vector.shape_cast %169 : vector<32x17xf32> to vector<1x32x17xf32>
      tpu.vector_store %arg7[%c3_84, %c0_85, %c0_86], %172 {strides = array<i32>} : memref<4x32x17xf32, #tpu.memory_space<vmem>>, vector<1x32x17xf32>,
      %c3_87 = arith.constant 3 : index
      %c0_88 = arith.constant 0 : index
      %c0_89 = arith.constant 0 : index
      %173 = vector.load %arg8[%c3_87, %c0_88, %c0_89] : memref<4x1x17xf32, #tpu.memory_space<vmem>>, vector<1x1x17xf32>
      %174 = vector.shape_cast %173 : vector<1x1x17xf32> to vector<1x17xf32>
      %175 = vector.extract_strided_slice %26 {offsets = [3, 0, 0], sizes = [1, 8, 17], strides = [1, 1, 1]} : vector<4x8x17xbf16> to vector<1x8x17xbf16>
      %176 = vector.shape_cast %175 : vector<1x8x17xbf16> to vector<8x17xbf16>
      %177 = arith.extf %176 : vector<8x17xbf16> to vector<8x17xf32>
      %cst_90 = arith.constant dense<0.000000e+00> : vector<17xf32>
      %178 = vector.multi_reduction <add>, %177, %cst_90 [0] : vector<8x17xf32> to vector<17xf32>
      %179 = vector.shape_cast %178 : vector<17xf32> to vector<1x17xf32>
      %180 = arith.addf %174, %179 : vector<1x17xf32>
      %c3_91 = arith.constant 3 : index
      %c0_92 = arith.constant 0 : index
      %c0_93 = arith.constant 0 : index
      %181 = vector.load %arg8[%c3_91, %c0_92, %c0_93] : memref<4x1x17xf32, #tpu.memory_space<vmem>>, vector<1x1x17xf32>
      %182 = vector.shape_cast %181 : vector<1x1x17xf32> to vector<1x17xf32>
      %183 = vector.shape_cast %180 : vector<1x17xf32> to vector<1x1x17xf32>
      tpu.vector_store %arg8[%c3_91, %c0_92, %c0_93], %183 {strides = array<i32>} : memref<4x1x17xf32, #tpu.memory_space<vmem>>, vector<1x1x17xf32>,
      %c3_94 = arith.constant 3 : index
      %c0_95 = arith.constant 0 : index
      %c0_96 = arith.constant 0 : index
      %184 = vector.load %arg9[%c3_94, %c0_95, %c0_96] : memref<4x1x1xf32, #tpu.memory_space<vmem>>, vector<1x1x1xf32>
      %185 = vector.shape_cast %184 : vector<1x1x1xf32> to vector<1x1xf32>
      %186 = vector.shape_cast %155 : vector<1x1xf32> to vector<1x1x1xf32>
      tpu.vector_store %arg9[%c3_94, %c0_95, %c0_96], %186 {strides = array<i32>} : memref<4x1x1xf32, #tpu.memory_space<vmem>>, vector<1x1x1xf32>,
    } else {
    }
    %c1_i32_3 = arith.constant 1 : i32
    %7 = arith.cmpi eq, %arg1, %c1_i32_3 : i32
    %8 = arith.extui %7 : i1 to i32
    %c0_i32_4 = arith.constant 0 : i32
    %9 = arith.cmpi ne, %8, %c0_i32_4 : i32
    scf.if %9 {
      %c0_7 = arith.constant 0 : index
      %c0_8 = arith.constant 0 : index
      %c0_9 = arith.constant 0 : index
      %13 = vector.load %arg7[%c0_7, %c0_8, %c0_9] : memref<4x32x17xf32, #tpu.memory_space<vmem>>, vector<1x32x17xf32>
      %14 = vector.shape_cast %13 : vector<1x32x17xf32> to vector<32x17xf32>
      %c0_10 = arith.constant 0 : index
      %c0_11 = arith.constant 0 : index
      %c0_12 = arith.constant 0 : index
      %15 = vector.load %arg8[%c0_10, %c0_11, %c0_12] : memref<4x1x17xf32, #tpu.memory_space<vmem>>, vector<1x1x17xf32>
      %16 = vector.shape_cast %15 : vector<1x1x17xf32> to vector<1x17xf32>
      %cst = arith.constant 9.99999974E-5 : f32
      %17 = vector.broadcast %cst : f32 to vector<1x17xf32>
      %18 = arith.mulf %17, %16 : vector<1x17xf32>
      %19 = vector.broadcast %18 : vector<1x17xf32> to vector<32x17xf32>
      %20 = arith.addf %14, %19 : vector<32x17xf32>
      %c0_13 = arith.constant 0 : index
      %c0_14 = arith.constant 0 : index
      %c0_15 = arith.constant 0 : index
      %21 = vector.load %arg7[%c0_13, %c0_14, %c0_15] : memref<4x32x17xf32, #tpu.memory_space<vmem>>, vector<1x32x17xf32>
      %22 = vector.shape_cast %21 : vector<1x32x17xf32> to vector<32x17xf32>
      %23 = vector.shape_cast %20 : vector<32x17xf32> to vector<1x32x17xf32>
      tpu.vector_store %arg7[%c0_13, %c0_14, %c0_15], %23 {strides = array<i32>} : memref<4x32x17xf32, #tpu.memory_space<vmem>>, vector<1x32x17xf32>,
      %c1 = arith.constant 1 : index
      %c0_16 = arith.constant 0 : index
      %c0_17 = arith.constant 0 : index
      %24 = vector.load %arg7[%c1, %c0_16, %c0_17] : memref<4x32x17xf32, #tpu.memory_space<vmem>>, vector<1x32x17xf32>
      %25 = vector.shape_cast %24 : vector<1x32x17xf32> to vector<32x17xf32>
      %c1_18 = arith.constant 1 : index
      %c0_19 = arith.constant 0 : index
      %c0_20 = arith.constant 0 : index
      %26 = vector.load %arg8[%c1_18, %c0_19, %c0_20] : memref<4x1x17xf32, #tpu.memory_space<vmem>>, vector<1x1x17xf32>
      %27 = vector.shape_cast %26 : vector<1x1x17xf32> to vector<1x17xf32>
      %cst_21 = arith.constant 9.99999974E-5 : f32
      %28 = vector.broadcast %cst_21 : f32 to vector<1x17xf32>
      %29 = arith.mulf %28, %27 : vector<1x17xf32>
      %30 = vector.broadcast %29 : vector<1x17xf32> to vector<32x17xf32>
      %31 = arith.addf %25, %30 : vector<32x17xf32>
      %c1_22 = arith.constant 1 : index
      %c0_23 = arith.constant 0 : index
      %c0_24 = arith.constant 0 : index
      %32 = vector.load %arg7[%c1_22, %c0_23, %c0_24] : memref<4x32x17xf32, #tpu.memory_space<vmem>>, vector<1x32x17xf32>
      %33 = vector.shape_cast %32 : vector<1x32x17xf32> to vector<32x17xf32>
      %34 = vector.shape_cast %31 : vector<32x17xf32> to vector<1x32x17xf32>
      tpu.vector_store %arg7[%c1_22, %c0_23, %c0_24], %34 {strides = array<i32>} : memref<4x32x17xf32, #tpu.memory_space<vmem>>, vector<1x32x17xf32>,
      %c2 = arith.constant 2 : index
      %c0_25 = arith.constant 0 : index
      %c0_26 = arith.constant 0 : index
      %35 = vector.load %arg7[%c2, %c0_25, %c0_26] : memref<4x32x17xf32, #tpu.memory_space<vmem>>, vector<1x32x17xf32>
      %36 = vector.shape_cast %35 : vector<1x32x17xf32> to vector<32x17xf32>
      %c2_27 = arith.constant 2 : index
      %c0_28 = arith.constant 0 : index
      %c0_29 = arith.constant 0 : index
      %37 = vector.load %arg8[%c2_27, %c0_28, %c0_29] : memref<4x1x17xf32, #tpu.memory_space<vmem>>, vector<1x1x17xf32>
      %38 = vector.shape_cast %37 : vector<1x1x17xf32> to vector<1x17xf32>
      %cst_30 = arith.constant 9.99999974E-5 : f32
      %39 = vector.broadcast %cst_30 : f32 to vector<1x17xf32>
      %40 = arith.mulf %39, %38 : vector<1x17xf32>
      %41 = vector.broadcast %40 : vector<1x17xf32> to vector<32x17xf32>
      %42 = arith.addf %36, %41 : vector<32x17xf32>
      %c2_31 = arith.constant 2 : index
      %c0_32 = arith.constant 0 : index
      %c0_33 = arith.constant 0 : index
      %43 = vector.load %arg7[%c2_31, %c0_32, %c0_33] : memref<4x32x17xf32, #tpu.memory_space<vmem>>, vector<1x32x17xf32>
      %44 = vector.shape_cast %43 : vector<1x32x17xf32> to vector<32x17xf32>
      %45 = vector.shape_cast %42 : vector<32x17xf32> to vector<1x32x17xf32>
      tpu.vector_store %arg7[%c2_31, %c0_32, %c0_33], %45 {strides = array<i32>} : memref<4x32x17xf32, #tpu.memory_space<vmem>>, vector<1x32x17xf32>,
      %c3 = arith.constant 3 : index
      %c0_34 = arith.constant 0 : index
      %c0_35 = arith.constant 0 : index
      %46 = vector.load %arg7[%c3, %c0_34, %c0_35] : memref<4x32x17xf32, #tpu.memory_space<vmem>>, vector<1x32x17xf32>
      %47 = vector.shape_cast %46 : vector<1x32x17xf32> to vector<32x17xf32>
      %c3_36 = arith.constant 3 : index
      %c0_37 = arith.constant 0 : index
      %c0_38 = arith.constant 0 : index
      %48 = vector.load %arg8[%c3_36, %c0_37, %c0_38] : memref<4x1x17xf32, #tpu.memory_space<vmem>>, vector<1x1x17xf32>
      %49 = vector.shape_cast %48 : vector<1x1x17xf32> to vector<1x17xf32>
      %cst_39 = arith.constant 9.99999974E-5 : f32
      %50 = vector.broadcast %cst_39 : f32 to vector<1x17xf32>
      %51 = arith.mulf %50, %49 : vector<1x17xf32>
      %52 = vector.broadcast %51 : vector<1x17xf32> to vector<32x17xf32>
      %53 = arith.addf %47, %52 : vector<32x17xf32>
      %c3_40 = arith.constant 3 : index
      %c0_41 = arith.constant 0 : index
      %c0_42 = arith.constant 0 : index
      %54 = vector.load %arg7[%c3_40, %c0_41, %c0_42] : memref<4x32x17xf32, #tpu.memory_space<vmem>>, vector<1x32x17xf32>
      %55 = vector.shape_cast %54 : vector<1x32x17xf32> to vector<32x17xf32>
      %56 = vector.shape_cast %53 : vector<32x17xf32> to vector<1x32x17xf32>
      tpu.vector_store %arg7[%c3_40, %c0_41, %c0_42], %56 {strides = array<i32>} : memref<4x32x17xf32, #tpu.memory_space<vmem>>, vector<1x32x17xf32>,
    } else {
    }
    %c1_i32_5 = arith.constant 1 : i32
    %10 = arith.cmpi sge, %arg1, %c1_i32_5 : i32
    %11 = arith.extui %10 : i1 to i32
    %c0_i32_6 = arith.constant 0 : i32
    %12 = arith.cmpi ne, %11, %c0_i32_6 : i32
    scf.if %12 {
      %c0_7 = arith.constant 0 : index
      %c0_8 = arith.constant 0 : index
      %c0_9 = arith.constant 0 : index
      %13 = vector.load %arg2[%c0_7, %c0_8, %c0_9] : memref<4x8x16xbf16, #tpu.memory_space<vmem>>, vector<4x8x16xbf16>
      %14 = vector.shape_cast %13 : vector<4x8x16xbf16> to vector<32x16xbf16>
      %cst = arith.constant dense<0.000000e+00> : vector<32x32xf32>
      %15 = tpu.matmul %14, %0, %cst {dimension_numbers = #tpu.dot_dimension_numbers<[1], [0], [0], [1], [0, 0, 1, 1], [], []>} : vector<32x16xbf16>, vector<16x32xbf16>, vector<32x32xf32> -> vector<32x32xf32>
      %16 = arith.extf %14 : vector<32x16xbf16> to vector<32x16xf32>
      %17 = arith.mulf %16, %16 : vector<32x16xf32>
      %cst_10 = arith.constant dense<0.000000e+00> : vector<32xf32>
      %18 = vector.multi_reduction <add>, %17, %cst_10 [1] : vector<32x16xf32> to vector<32xf32>
      %19 = vector.shape_cast %18 : vector<32xf32> to vector<32x1xf32>
      %cst_11 = arith.constant 1.250000e-01 : f32
      %20 = vector.broadcast %cst_11 : f32 to vector<32x1xf32>
      %21 = arith.mulf %19, %20 : vector<32x1xf32>
      %cst_12 = arith.constant dense<0xFF800000> : vector<32xf32>
      %22 = vector.multi_reduction <maximumf>, %15, %cst_12 [1] : vector<32x32xf32> to vector<32xf32>
      %23 = vector.shape_cast %22 : vector<32xf32> to vector<32x1xf32>
      %24 = arith.addf %21, %23 : vector<32x1xf32>
      %25 = vector.broadcast %24 : vector<32x1xf32> to vector<32x32xf32>
      %26 = arith.subf %15, %25 : vector<32x32xf32>
      %27 = math.exp %26 : vector<32x32xf32>
      %cst_13 = arith.constant 9.99999974E-5 : f32
      %28 = vector.broadcast %cst_13 : f32 to vector<32x32xf32>
      %29 = arith.addf %27, %28 : vector<32x32xf32>
      %30 = arith.truncf %29 : vector<32x32xf32> to vector<32x32xbf16>
      %c0_14 = arith.constant 0 : index
      %c0_15 = arith.constant 0 : index
      %c0_16 = arith.constant 0 : index
      %31 = vector.load %arg7[%c0_14, %c0_15, %c0_16] : memref<4x32x17xf32, #tpu.memory_space<vmem>>, vector<1x32x17xf32>
      %32 = vector.shape_cast %31 : vector<1x32x17xf32> to vector<32x17xf32>
      %33 = arith.truncf %32 : vector<32x17xf32> to vector<32x17xbf16>
      %34 = vector.extract_strided_slice %30 {offsets = [0, 0], sizes = [8, 32], strides = [1, 1]} : vector<32x32xbf16> to vector<8x32xbf16>
      %cst_17 = arith.constant dense<0.000000e+00> : vector<8x17xf32>
      %35 = tpu.matmul %34, %33, %cst_17 {dimension_numbers = #tpu.dot_dimension_numbers<[1], [0], [0], [1], [0, 0, 1, 1], [], []>} : vector<8x32xbf16>, vector<32x17xbf16>, vector<8x17xf32> -> vector<8x17xf32>
      %36 = vector.extract_strided_slice %35 {offsets = [0, 16], sizes = [8, 1], strides = [1, 1]} : vector<8x17xf32> to vector<8x1xf32>
      %37 = tpu.reciprocal %36 {approx = true} : vector<8x1xf32> -> vector<8x1xf32>
      %38 = vector.extract_strided_slice %35 {offsets = [0, 0], sizes = [8, 16], strides = [1, 1]} : vector<8x17xf32> to vector<8x16xf32>
      %39 = vector.broadcast %37 : vector<8x1xf32> to vector<8x16xf32>
      %40 = arith.mulf %38, %39 : vector<8x16xf32>
      %c1 = arith.constant 1 : index
      %c0_18 = arith.constant 0 : index
      %c0_19 = arith.constant 0 : index
      %41 = vector.load %arg7[%c1, %c0_18, %c0_19] : memref<4x32x17xf32, #tpu.memory_space<vmem>>, vector<1x32x17xf32>
      %42 = vector.shape_cast %41 : vector<1x32x17xf32> to vector<32x17xf32>
      %43 = arith.truncf %42 : vector<32x17xf32> to vector<32x17xbf16>
      %44 = vector.extract_strided_slice %30 {offsets = [8, 0], sizes = [8, 32], strides = [1, 1]} : vector<32x32xbf16> to vector<8x32xbf16>
      %cst_20 = arith.constant dense<0.000000e+00> : vector<8x17xf32>
      %45 = tpu.matmul %44, %43, %cst_20 {dimension_numbers = #tpu.dot_dimension_numbers<[1], [0], [0], [1], [0, 0, 1, 1], [], []>} : vector<8x32xbf16>, vector<32x17xbf16>, vector<8x17xf32> -> vector<8x17xf32>
      %46 = vector.extract_strided_slice %45 {offsets = [0, 16], sizes = [8, 1], strides = [1, 1]} : vector<8x17xf32> to vector<8x1xf32>
      %47 = tpu.reciprocal %46 {approx = true} : vector<8x1xf32> -> vector<8x1xf32>
      %48 = vector.extract_strided_slice %45 {offsets = [0, 0], sizes = [8, 16], strides = [1, 1]} : vector<8x17xf32> to vector<8x16xf32>
      %49 = vector.broadcast %47 : vector<8x1xf32> to vector<8x16xf32>
      %50 = arith.mulf %48, %49 : vector<8x16xf32>
      %c2 = arith.constant 2 : index
      %c0_21 = arith.constant 0 : index
      %c0_22 = arith.constant 0 : index
      %51 = vector.load %arg7[%c2, %c0_21, %c0_22] : memref<4x32x17xf32, #tpu.memory_space<vmem>>, vector<1x32x17xf32>
      %52 = vector.shape_cast %51 : vector<1x32x17xf32> to vector<32x17xf32>
      %53 = arith.truncf %52 : vector<32x17xf32> to vector<32x17xbf16>
      %54 = vector.extract_strided_slice %30 {offsets = [16, 0], sizes = [8, 32], strides = [1, 1]} : vector<32x32xbf16> to vector<8x32xbf16>
      %cst_23 = arith.constant dense<0.000000e+00> : vector<8x17xf32>
      %55 = tpu.matmul %54, %53, %cst_23 {dimension_numbers = #tpu.dot_dimension_numbers<[1], [0], [0], [1], [0, 0, 1, 1], [], []>} : vector<8x32xbf16>, vector<32x17xbf16>, vector<8x17xf32> -> vector<8x17xf32>
      %56 = vector.extract_strided_slice %55 {offsets = [0, 16], sizes = [8, 1], strides = [1, 1]} : vector<8x17xf32> to vector<8x1xf32>
      %57 = tpu.reciprocal %56 {approx = true} : vector<8x1xf32> -> vector<8x1xf32>
      %58 = vector.extract_strided_slice %55 {offsets = [0, 0], sizes = [8, 16], strides = [1, 1]} : vector<8x17xf32> to vector<8x16xf32>
      %59 = vector.broadcast %57 : vector<8x1xf32> to vector<8x16xf32>
      %60 = arith.mulf %58, %59 : vector<8x16xf32>
      %c3 = arith.constant 3 : index
      %c0_24 = arith.constant 0 : index
      %c0_25 = arith.constant 0 : index
      %61 = vector.load %arg7[%c3, %c0_24, %c0_25] : memref<4x32x17xf32, #tpu.memory_space<vmem>>, vector<1x32x17xf32>
      %62 = vector.shape_cast %61 : vector<1x32x17xf32> to vector<32x17xf32>
      %63 = arith.truncf %62 : vector<32x17xf32> to vector<32x17xbf16>
      %64 = vector.extract_strided_slice %30 {offsets = [24, 0], sizes = [8, 32], strides = [1, 1]} : vector<32x32xbf16> to vector<8x32xbf16>
      %cst_26 = arith.constant dense<0.000000e+00> : vector<8x17xf32>
      %65 = tpu.matmul %64, %63, %cst_26 {dimension_numbers = #tpu.dot_dimension_numbers<[1], [0], [0], [1], [0, 0, 1, 1], [], []>} : vector<8x32xbf16>, vector<32x17xbf16>, vector<8x17xf32> -> vector<8x17xf32>
      %66 = vector.extract_strided_slice %65 {offsets = [0, 16], sizes = [8, 1], strides = [1, 1]} : vector<8x17xf32> to vector<8x1xf32>
      %67 = tpu.reciprocal %66 {approx = true} : vector<8x1xf32> -> vector<8x1xf32>
      %68 = vector.extract_strided_slice %65 {offsets = [0, 0], sizes = [8, 16], strides = [1, 1]} : vector<8x17xf32> to vector<8x16xf32>
      %69 = vector.broadcast %67 : vector<8x1xf32> to vector<8x16xf32>
      %70 = arith.mulf %68, %69 : vector<8x16xf32>
      %71 = tpu.concatenate %40, %50, %60, %70 in 1 : vector<8x16xf32>, vector<8x16xf32>, vector<8x16xf32>, vector<8x16xf32> -> vector<8x64xf32>
      %72 = arith.truncf %71 : vector<8x64xf32> to vector<8x64xbf16>
      %c0_27 = arith.constant 0 : index
      %c0_28 = arith.constant 0 : index
      %c0_29 = arith.constant 0 : index
      %73 = vector.load %arg6[%c0_27, %c0_28, %c0_29] : memref<1x8x64xbf16, #tpu.memory_space<vmem>>, vector<1x8x64xbf16>
      %74 = vector.shape_cast %73 : vector<1x8x64xbf16> to vector<8x64xbf16>
      %75 = vector.shape_cast %72 : vector<8x64xbf16> to vector<1x8x64xbf16>
      tpu.vector_store %arg6[%c0_27, %c0_28, %c0_29], %75 {strides = array<i32>} : memref<1x8x64xbf16, #tpu.memory_space<vmem>>, vector<1x8x64xbf16>,
    } else {
    }
    return
  }
  func.func @transform_0(%arg0: i32, %arg1: i32) -> (i32, i32, i32) {
    %c1_i32 = arith.constant 1 : i32
    %0 = arith.subi %arg1, %c1_i32 : i32
    %c0_i32 = arith.constant 0 : i32
    %1 = arith.maxsi %0, %c0_i32 : i32
    %c0_i32_0 = arith.constant 0 : i32
    %c0_i32_1 = arith.constant 0 : i32
    return %arg0, %1, %c0_i32_0 : i32, i32, i32
  }
  func.func @transform_1(%arg0: i32, %arg1: i32) -> (i32, i32, i32) {
    %c0_i32 = arith.constant 0 : i32
    %0 = arith.minsi %arg1, %c0_i32 : i32
    %c0_i32_0 = arith.constant 0 : i32
    %c0_i32_1 = arith.constant 0 : i32
    return %arg0, %0, %c0_i32_0 : i32, i32, i32
  }
  func.func @transform_2(%arg0: i32, %arg1: i32) -> (i32, i32, i32) {
    %c0_i32 = arith.constant 0 : i32
    %0 = arith.minsi %arg1, %c0_i32 : i32
    %c0_i32_0 = arith.constant 0 : i32
    %c0_i32_1 = arith.constant 0 : i32
    return %arg0, %0, %c0_i32_0 : i32, i32, i32
  }
  func.func @transform_3(%arg0: i32, %arg1: i32) -> (i32, i32) {
    %c0_i32 = arith.constant 0 : i32
    %c0_i32_0 = arith.constant 0 : i32
    %c0_i32_1 = arith.constant 0 : i32
    return %c0_i32, %c0_i32_0 : i32, i32
  }
  func.func @transform_4(%arg0: i32, %arg1: i32) -> (i32, i32, i32) {
    %c1_i32 = arith.constant 1 : i32
    %0 = arith.subi %arg1, %c1_i32 : i32
    %c0_i32 = arith.constant 0 : i32
    %1 = arith.maxsi %0, %c0_i32 : i32
    %c0_i32_0 = arith.constant 0 : i32
    %c0_i32_1 = arith.constant 0 : i32
    return %arg0, %1, %c0_i32_0 : i32, i32, i32
  }
}

</mosaic_0001>

<llo_original>
// kernel: tpu_custom_call.1
$region0: #{tpu_custom_call.1}
  #allocation0 [shape = 'u32[]', space=smem, size = 0x4, offset = 0x4, fixed_abs, tag = 'smem constant byte address 0x4 - core index']
  #allocation1 [shape = 'u32[144,128]{1,0:T(1,128)}', space=vmem, size = 0x12000, scoped, tag = 'internal scratch']
  #allocation2 [shape = 'f32[4,32,17]{2,1,0:T(8,128)}', space=vmem, size = 0x10000, scoped, tag = 'scratch operand']
  #allocation3 [shape = 'f32[4,1,17]{2,1,0:T(1,128)}', space=vmem, size = 0x800, scoped, tag = 'scratch operand']
  #allocation4 [shape = 'f32[4,1,1]{2,1,0:T(1,128)}', space=vmem, size = 0x800, scoped, tag = 'scratch operand']
  %s0 = inlined_call_operand.hbm [shape: bf16[4,8,16], index: 0, kind: input, shape index: {}]
  %s1 = inlined_call_operand.hbm [shape: bf16[4,8,16], index: 1, kind: input, shape index: {}]
  %s2 = inlined_call_operand.hbm [shape: bf16[4,8,16], index: 2, kind: input, shape index: {}]
  %s3 = inlined_call_operand.vmem [shape: bf16[16,32], index: 3, kind: input, shape index: {}]
  %s4 = inlined_call_operand.hbm [shape: bf16[1,8,64], index: 4, kind: output, shape index: {}]
  %s5 = sld [smem:[#allocation0]]
  $region77: #{tpu_custom_call.1} parent=0
    _
  %s7 = ssub.s32 1, %s5
  %s8 = scalar_select 0, %s7, %s5
  $region1: #{tpu_custom_call.1} parent=0
    #allocation5 [shape = 'u8[16384]{0}', space=vmem, size = 0x4000, scoped, tag = 'input window, operand 0']
    #allocation6 [shape = 's32[2]{0}', space=sflag, size = 0x8, scoped, tag = 'scoped memory for tpu_custom_call.1']
    #allocation7 [shape = 's32[2]{0}', space=sflag, size = 0x8, scoped, tag = 'scoped memory for tpu_custom_call.1']
    #allocation8 [shape = 'u8[16384]{0}', space=vmem, size = 0x4000, scoped, tag = 'input window, operand 1']
    #allocation9 [shape = 's32[2]{0}', space=sflag, size = 0x8, scoped, tag = 'scoped memory for tpu_custom_call.1']
    #allocation10 [shape = 'u8[16384]{0}', space=vmem, size = 0x4000, scoped, tag = 'input window, operand 2']
    #allocation11 [shape = 'u8[4096]{0}', space=vmem, size = 0x1000, scoped, tag = 'output window, operand 0']
    %9 = vsyncpa [#allocation6], 0
    %s10 = scalar_lea.sflag [#allocation6], 1
    %11 = vsyncpa %s10, 0
    %12 = vsyncpa [#allocation9], 0
    %s13 = scalar_lea.sflag [#allocation9], 1
    %14 = vsyncpa %s13, 0
    %15 = vsyncpa [#allocation7], 0
    %s16 = scalar_lea.sflag [#allocation7], 1
    %17 = vsyncpa %s16, 0
    loop: start=0, step=1, limit=4
    $region2: #{tpu_custom_call.1} parent=1 // loop_pre_header
      _
    $region3: #{tpu_custom_call.1} parent=1 // loop_header
      %s19 = sphi 0, %s23
      %p20 = scmp.ge.s32.totalorder %s19, 4
      %s26 = sphi 0, %s38
      %s27 = sphi 0, %s34
      %s28 = sphi 0, %s26
      %s29 = sphi 0, %s27
      %s30 = sphi 0, %s28
      %s31 = sphi 0, %s29
      %s49 = sphi 0, %s51
      %s52 = sphi 0, %s49
      %s53 = sphi 0, %s52
      %s69 = sphi 0, %s53
      %s81 = sphi 0, %s83
      %s84 = sphi 0, %s81
      %s85 = sphi 0, %s84
      %s101 = sphi 0, %s85
      %s113 = sphi 0, %s115
      %s116 = sphi 0, %s113
      %s117 = sphi 0, %s116
      %s133 = sphi 0, %s117
      %s137 = sphi 0, %s137
      %s139 = sphi 0, %s137
      %s140 = sphi 0, %s139
      %s154 = sphi 0, %s140
      %s168 = sphi 0, %s170
      %s171 = sphi 0, %s168
      %s172 = sphi 0, %s171
      %s188 = sphi 0, %s172
    $region4: #{tpu_custom_call.1} parent=1 // loop_header_branch
      %22 = sbr.rel (%p20) target = $region8
    $region5: #{tpu_custom_call.1} parent=1 // loop_body
      %s24 = ssub.s32 %s19, 1
      %s25 = ssub.s32 %s19, 2
      %s32 = sadd.s32 1, %s27
      %p33 = scmp.ge.s32.totalorder %s32, 2
      %s34 = scalar_select %p33, 0, %s32
      %s35 = sadd.s32 1, %s26
      %s36 = scalar_select %p33, %s35, %s26
      %p37 = scmp.ge.s32.totalorder %s36, 1
      %s38 = scalar_select %p37, 0, %s36
      %s39 = ssub.s32 %s27, 1
      %p40 = scmp.gt.s32.totalorder %s39, 0
      %s41 = scalar_select %p40, %s39, 0
      %s42 = ssub.s32 %s34, 1
      %p43 = scmp.gt.s32.totalorder %s42, 0
      %s44 = scalar_select %p43, %s42, 0
      %s45 = ssub.s32 %s26, %s38
      %s46 = ssub.s32 %s41, %s44
      %s47 = sor.u32 %s45, %s46
      %p48 = scmp.eq.s32.totalorder %s47, 0
      %s50 = sadd.s32 %s49, 1
      %s51 = scalar_select %p48, %s49, %s50
      %p54 = pneg %p48
      %p55 = scmp.eq.s32.totalorder %s19, 1
      %p56 = por %p54, %p55
      %p57 = scmp.ne.s32.totalorder %s49, %s52
      %p58 = scmp.eq.s32.totalorder %s19, 0
      %p59 = por %p57, %p58
      %p60 = scmp.ne.s32.totalorder %s49, %s52
      %p61 = scmp.eq.s32.totalorder %s24, 1
      %p62 = por %p60, %p61
      %p63 = scmp.ne.s32.totalorder %s52, %s53
      %p64 = scmp.eq.s32.totalorder %s24, 0
      %p65 = por %p63, %p64
      %p66 = scmp.ne.s32.totalorder %s52, %s53
      %p67 = scmp.eq.s32.totalorder %s25, 1
      %p68 = por %p66, %p67
      %p70 = scmp.ne.s32.totalorder %s53, %s69
      %p71 = scmp.eq.s32.totalorder %s25, 0
      %p72 = por %p70, %p71
      %p73 = scmp.lt.s32.totalorder %s27, 0
      %s74 = scalar_select %p73, %s27, 0
      %p75 = scmp.lt.s32.totalorder %s34, 0
      %s76 = scalar_select %p75, %s34, 0
      %s77 = ssub.s32 %s26, %s38
      %s78 = ssub.s32 %s74, %s76
      %s79 = sor.u32 %s77, %s78
      %p80 = scmp.eq.s32.totalorder %s79, 0
      %s82 = sadd.s32 %s81, 1
      %s83 = scalar_select %p80, %s81, %s82
      %p86 = pneg %p80
      %p87 = scmp.eq.s32.totalorder %s19, 1
      %p88 = por %p86, %p87
      %p89 = scmp.ne.s32.totalorder %s81, %s84
      %p90 = scmp.eq.s32.totalorder %s19, 0
      %p91 = por %p89, %p90
      %p92 = scmp.ne.s32.totalorder %s81, %s84
      %p93 = scmp.eq.s32.totalorder %s24, 1
      %p94 = por %p92, %p93
      %p95 = scmp.ne.s32.totalorder %s84, %s85
      %p96 = scmp.eq.s32.totalorder %s24, 0
      %p97 = por %p95, %p96
      %p98 = scmp.ne.s32.totalorder %s84, %s85
      %p99 = scmp.eq.s32.totalorder %s25, 1
      %p100 = por %p98, %p99
      %p102 = scmp.ne.s32.totalorder %s85, %s101
      %p103 = scmp.eq.s32.totalorder %s25, 0
      %p104 = por %p102, %p103
      %p105 = scmp.lt.s32.totalorder %s27, 0
      %s106 = scalar_select %p105, %s27, 0
      %p107 = scmp.lt.s32.totalorder %s34, 0
      %s108 = scalar_select %p107, %s34, 0
      %s109 = ssub.s32 %s26, %s38
      %s110 = ssub.s32 %s106, %s108
      %s111 = sor.u32 %s109, %s110
      %p112 = scmp.eq.s32.totalorder %s111, 0
      %s114 = sadd.s32 %s113, 1
      %s115 = scalar_select %p112, %s113, %s114
      %p118 = pneg %p112
      %p119 = scmp.eq.s32.totalorder %s19, 1
      %p120 = por %p118, %p119
      %p121 = scmp.ne.s32.totalorder %s113, %s116
      %p122 = scmp.eq.s32.totalorder %s19, 0
      %p123 = por %p121, %p122
      %p124 = scmp.ne.s32.totalorder %s113, %s116
      %p125 = scmp.eq.s32.totalorder %s24, 1
      %p126 = por %p124, %p125
      %p127 = scmp.ne.s32.totalorder %s116, %s117
      %p128 = scmp.eq.s32.totalorder %s24, 0
      %p129 = por %p127, %p128
      %p130 = scmp.ne.s32.totalorder %s116, %s117
      %p131 = scmp.eq.s32.totalorder %s25, 1
      %p132 = por %p130, %p131
      %p134 = scmp.ne.s32.totalorder %s117, %s133
      %p135 = scmp.eq.s32.totalorder %s25, 0
      %p136 = por %p134, %p135
      %s138 = sadd.s32 %s137, 1
      %p141 = scmp.eq.s32.totalorder %s19, 1
      %p142 = scmp.ne.s32.totalorder %s137, %s139
      %p143 = scmp.eq.s32.totalorder %s19, 0
      %p144 = por %p142, %p143
      %p145 = scmp.ne.s32.totalorder %s137, %s139
      %p146 = scmp.eq.s32.totalorder %s24, 1
      %p147 = por %p145, %p146
      %p148 = scmp.ne.s32.totalorder %s139, %s140
      %p149 = scmp.eq.s32.totalorder %s24, 0
      %p150 = por %p148, %p149
      %p151 = scmp.ne.s32.totalorder %s139, %s140
      %p152 = scmp.eq.s32.totalorder %s25, 1
      %p153 = por %p151, %p152
      %p155 = scmp.ne.s32.totalorder %s140, %s154
      %p156 = scmp.eq.s32.totalorder %s25, 0
      %p157 = por %p155, %p156
      %s158 = ssub.s32 %s27, 1
      %p159 = scmp.gt.s32.totalorder %s158, 0
      %s160 = scalar_select %p159, %s158, 0
      %s161 = ssub.s32 %s34, 1
      %p162 = scmp.gt.s32.totalorder %s161, 0
      %s163 = scalar_select %p162, %s161, 0
      %s164 = ssub.s32 %s26, %s38
      %s165 = ssub.s32 %s160, %s163
      %s166 = sor.u32 %s164, %s165
      %p167 = scmp.eq.s32.totalorder %s166, 0
      %s169 = sadd.s32 %s168, 1
      %s170 = scalar_select %p167, %s168, %s169
      %p173 = pneg %p167
      %p174 = scmp.eq.s32.totalorder %s19, 1
      %p175 = por %p173, %p174
      %p176 = scmp.ne.s32.totalorder %s168, %s171
      %p177 = scmp.eq.s32.totalorder %s19, 0
      %p178 = por %p176, %p177
      %p179 = scmp.ne.s32.totalorder %s168, %s171
      %p180 = scmp.eq.s32.totalorder %s24, 1
      %p181 = por %p179, %p180
      %p182 = scmp.ne.s32.totalorder %s171, %s172
      %p183 = scmp.eq.s32.totalorder %s24, 0
      %p184 = por %p182, %p183
      %p185 = scmp.ne.s32.totalorder %s171, %s172
      %p186 = scmp.eq.s32.totalorder %s25, 1
      %p187 = por %p185, %p186
      %p189 = scmp.ne.s32.totalorder %s172, %s188
      %p190 = scmp.eq.s32.totalorder %s25, 0
      %p191 = por %p189, %p190
      %p192 = scmp.le.s32.totalorder 1, %s19
      %p193 = scmp.lt.s32.totalorder %s19, 3
      %p194 = pnand %p192, %p193
      %p195 = pneg %p194
      // Predicated region
      $region9: #{tpu_custom_call.1} parent=5 // pred_check
        _
      $region10: #{tpu_custom_call.1} parent=5 // pred_check_branch
        %197 = sbr.rel (%p194) target = $region12
      $region11: #{tpu_custom_call.1} parent=5 // pred_region
        %s198 = ssub.s32 %s19, 1
        // Predicated region
        $region13: #{tpu_custom_call.1} parent=11 // pred_check
          %p199 = pneg %p150
        $region14: #{tpu_custom_call.1} parent=11 // pred_check_branch
          %201 = sbr.rel (%p199) target = $region16
        $region15: #{tpu_custom_call.1} parent=11 // pred_region
          _
        $region16: #{tpu_custom_call.1} parent=11 // pred_fallthru
          _
      $region12: #{tpu_custom_call.1} parent=5 // pred_fallthru
        _
      %p202 = scmp.lt.s32.totalorder %s19, 2
      // Predicated region
      $region17: #{tpu_custom_call.1} parent=5 // pred_check
        %p203 = pneg %p202
      $region18: #{tpu_custom_call.1} parent=5 // pred_check_branch
        %205 = sbr.rel (%p203) target = $region20
      $region19: #{tpu_custom_call.1} parent=5 // pred_region
        // Predicated region
        $region21: #{tpu_custom_call.1} parent=19 // pred_check
          %p206 = pneg %p59
        $region22: #{tpu_custom_call.1} parent=19 // pred_check_branch
          %208 = sbr.rel (%p206) target = $region24
        $region23: #{tpu_custom_call.1} parent=19 // pred_region
          %s209 = sand.u32 %s49, 1
          %s210 = scalar_lea.sflag [#allocation6], %s209
          %s211 = sand.u32 %s49, 1
          %s212 = smul.addr %s211, 16
          %s213 = scalar_lea.vmem [#allocation5], %s212
          %s214 = ssub.s32 %s27, 1
          %p215 = scmp.gt.s32.totalorder %s214, 0
          %s216 = scalar_select %p215, %s214, 0
          %s217 = smul.u32 4, %s26
          %s219 = ssub.s32 256, 256
          %220 = vsyncadd %s210, %s219
          %s221 = sadd.s32 %s216, %s217
          %s222 = smul.addr %s221, 64
          %s223 = scalar_lea.hbm %s0, %s222
          %s224 = sshll.u32 %s213, 4
          %s225 = int_to_ptr.vmem [resolvable:$true] %s224
          %230 = dma.hbm_to_vmem [thread:$0]  %s223, 256, %s225, %s210, 64, 64, 4
        $region24: #{tpu_custom_call.1} parent=19 // pred_fallthru
          _
        // Predicated region
        $region25: #{tpu_custom_call.1} parent=19 // pred_check
          %p231 = pneg %p91
        $region26: #{tpu_custom_call.1} parent=19 // pred_check_branch
          %233 = sbr.rel (%p231) target = $region28
        $region27: #{tpu_custom_call.1} parent=19 // pred_region
          %s234 = sand.u32 %s19, 1
          %s235 = scalar_lea.sflag [#allocation9], %s234
          %s236 = sand.u32 %s81, 1
          %s237 = smul.addr %s236, 16
          %s238 = scalar_lea.vmem [#allocation8], %s237
          %p239 = scmp.lt.s32.totalorder %s27, 0
          %s240 = scalar_select %p239, %s27, 0
          %s241 = smul.u32 4, %s26
          %s243 = ssub.s32 256, 256
          %244 = vsyncadd %s235, %s243
          %s245 = sadd.s32 %s240, %s241
          %s246 = smul.addr %s245, 64
          %s247 = scalar_lea.hbm %s1, %s246
          %s248 = sshll.u32 %s238, 4
          %s249 = int_to_ptr.vmem [resolvable:$true] %s248
          %254 = dma.hbm_to_vmem [thread:$0]  %s247, 256, %s249, %s235, 64, 64, 4
        $region28: #{tpu_custom_call.1} parent=19 // pred_fallthru
          _
        // Predicated region
        $region29: #{tpu_custom_call.1} parent=19 // pred_check
          %p255 = pneg %p123
        $region30: #{tpu_custom_call.1} parent=19 // pred_check_branch
          %257 = sbr.rel (%p255) target = $region32
        $region31: #{tpu_custom_call.1} parent=19 // pred_region
          %s258 = sand.u32 %s19, 1
          %s259 = scalar_lea.sflag [#allocation9], %s258
          %s260 = sand.u32 %s113, 1
          %s261 = smul.addr %s260, 16
          %s262 = scalar_lea.vmem [#allocation10], %s261
          %p263 = scmp.lt.s32.totalorder %s27, 0
          %s264 = scalar_select %p263, %s27, 0
          %s265 = smul.u32 4, %s26
          %s267 = ssub.s32 256, 256
          %268 = vsyncadd %s259, %s267
          %s269 = sadd.s32 %s264, %s265
          %s270 = smul.addr %s269, 64
          %s271 = scalar_lea.hbm %s2, %s270
          %s272 = sshll.u32 %s262, 4
          %s273 = int_to_ptr.vmem [resolvable:$true] %s272
          %278 = dma.hbm_to_vmem [thread:$0]  %s271, 256, %s273, %s259, 64, 64, 4
        $region32: #{tpu_custom_call.1} parent=19 // pred_fallthru
          _
      $region20: #{tpu_custom_call.1} parent=5 // pred_fallthru
        _
      %p279 = scmp.le.s32.totalorder 1, %s19
      %p280 = scmp.lt.s32.totalorder %s19, 3
      %p281 = pnand %p279, %p280
      %p282 = pneg %p281
      // Predicated region
      $region33: #{tpu_custom_call.1} parent=5 // pred_check
        _
      $region34: #{tpu_custom_call.1} parent=5 // pred_check_branch
        %284 = sbr.rel (%p281) target = $region36
      $region35: #{tpu_custom_call.1} parent=5 // pred_region
        %s285 = ssub.s32 %s19, 1
        %s286 = sand.u32 %s52, 1
        %s287 = scalar_lea.sflag [#allocation6], %s286
        %s288 = sand.u32 %s52, 1
        %s289 = smul.addr %s288, 16
        %s290 = scalar_lea.vmem [#allocation5], %s289
        // Predicated region
        $region37: #{tpu_custom_call.1} parent=35 // pred_check
          %p291 = pneg %p65
        $region38: #{tpu_custom_call.1} parent=35 // pred_check_branch
          %293 = sbr.rel (%p291) target = $region40
        $region39: #{tpu_custom_call.1} parent=35 // pred_region
          %294 = dma.done %s287, 256
        $region40: #{tpu_custom_call.1} parent=35 // pred_fallthru
          _
        %s295 = sand.u32 %s24, 1
        %s296 = scalar_lea.sflag [#allocation9], %s295
        %s297 = sand.u32 %s84, 1
        %s298 = smul.addr %s297, 16
        %s299 = scalar_lea.vmem [#allocation8], %s298
        // Predicated region
        $region41: #{tpu_custom_call.1} parent=35 // pred_check
          %p300 = pneg %p97
        $region42: #{tpu_custom_call.1} parent=35 // pred_check_branch
          %302 = sbr.rel (%p300) target = $region44
        $region43: #{tpu_custom_call.1} parent=35 // pred_region
          %303 = dma.done %s296, 256
        $region44: #{tpu_custom_call.1} parent=35 // pred_fallthru
          _
        %s304 = sand.u32 %s24, 1
        %s305 = scalar_lea.sflag [#allocation9], %s304
        %s306 = sand.u32 %s116, 1
        %s307 = smul.addr %s306, 16
        %s308 = scalar_lea.vmem [#allocation10], %s307
        // Predicated region
        $region45: #{tpu_custom_call.1} parent=35 // pred_check
          %p309 = pneg %p129
        $region46: #{tpu_custom_call.1} parent=35 // pred_check_branch
          %311 = sbr.rel (%p309) target = $region48
        $region47: #{tpu_custom_call.1} parent=35 // pred_region
          %312 = dma.done %s305, 256
        $region48: #{tpu_custom_call.1} parent=35 // pred_fallthru
          _
        %s313 = sand.u32 %s52, 1
        %s314 = scalar_lea.sflag [#allocation6], %s313
        %s315 = sand.u32 %s52, 1
        %s316 = smul.addr %s315, 16
        %s317 = scalar_lea.vmem [#allocation5], %s316
        %p318 = pneg %p65
        %p319 = pneg %p62
        %s320 = sand.u32 %s24, 1
        %s321 = scalar_lea.sflag [#allocation9], %s320
        %s322 = sand.u32 %s84, 1
        %s323 = smul.addr %s322, 16
        %s324 = scalar_lea.vmem [#allocation8], %s323
        %p325 = pneg %p97
        %p326 = pneg %p94
        %s327 = sand.u32 %s24, 1
        %s328 = scalar_lea.sflag [#allocation9], %s327
        %s329 = sand.u32 %s116, 1
        %s330 = smul.addr %s329, 16
        %s331 = scalar_lea.vmem [#allocation10], %s330
        %p332 = pneg %p129
        %p333 = pneg %p126
        %p334 = pneg %p150
        %p335 = pneg %p147
        %p336 = pneg %p184
        %p337 = pneg %p181
        %s338 = sand.u32 %s171, 1
        %s339 = scalar_lea.sflag [#allocation7], %s338
        %s340 = sand.u32 %s171, 1
        %s341 = smul.addr %s340, 4
        %s342 = scalar_lea.vmem [#allocation11], %s341
        %s343 = ssub.s32 %s29, 1
        %p344 = scmp.gt.s32.totalorder %s343, 0
        %s345 = scalar_select %p344, %s343, 0
        %s346 = smul.u32 4, %s28
        %p347 = scmp.lt.s32.totalorder %s29, 0
        %s348 = scalar_select %p347, %s29, 0
        %s349 = smul.u32 4, %s28
        %p350 = scmp.lt.s32.totalorder %s29, 0
        %s351 = scalar_select %p350, %s29, 0
        %s352 = smul.u32 4, %s28
        %s353 = ssub.s32 %s29, 1
        %p354 = scmp.gt.s32.totalorder %s353, 0
        %s355 = scalar_select %p354, %s353, 0
        %v358 = vld [vmem:[%s3] sm:$0xf]
        %v359 = vld [vmem:[%s3 + $0x4] sm:$0xf]
        %p360 = scmp.eq.s32.totalorder %s29, 0
        // Predicated region
        $region49: #{tpu_custom_call.1} parent=35 // pred_check
          %p361 = pneg %p360
        $region50: #{tpu_custom_call.1} parent=35 // pred_check_branch
          %363 = sbr.rel (%p361) target = $region52
        $region51: #{tpu_custom_call.1} parent=35 // pred_region
          %vm364 = vcmask 138240
          %365 = vst.msk [vmem:[#allocation2] sm:$0xff] %vm364, 0.0
          %366 = vst.msk [vmem:[#allocation2 + $0x8] sm:$0xff] %vm364, 0.0
          %367 = vst.msk [vmem:[#allocation2 + $0x10] sm:$0xff] %vm364, 0.0
          %368 = vst.msk [vmem:[#allocation2 + $0x18] sm:$0xff] %vm364, 0.0
          %369 = vst.msk [vmem:[#allocation2 + $0x20] sm:$0xff] %vm364, 0.0
          %370 = vst.msk [vmem:[#allocation2 + $0x28] sm:$0xff] %vm364, 0.0
          %371 = vst.msk [vmem:[#allocation2 + $0x30] sm:$0xff] %vm364, 0.0
          %372 = vst.msk [vmem:[#allocation2 + $0x38] sm:$0xff] %vm364, 0.0
          %373 = vst.msk [vmem:[#allocation2 + $0x40] sm:$0xff] %vm364, 0.0
          %374 = vst.msk [vmem:[#allocation2 + $0x48] sm:$0xff] %vm364, 0.0
          %375 = vst.msk [vmem:[#allocation2 + $0x50] sm:$0xff] %vm364, 0.0
          %376 = vst.msk [vmem:[#allocation2 + $0x58] sm:$0xff] %vm364, 0.0
          %377 = vst.msk [vmem:[#allocation2 + $0x60] sm:$0xff] %vm364, 0.0
          %378 = vst.msk [vmem:[#allocation2 + $0x68] sm:$0xff] %vm364, 0.0
          %379 = vst.msk [vmem:[#allocation2 + $0x70] sm:$0xff] %vm364, 0.0
          %380 = vst.msk [vmem:[#allocation2 + $0x78] sm:$0xff] %vm364, 0.0
          %vm381 = vcmask 131072
          %382 = vst.msk [vmem:[#allocation3] sm:$0x1] %vm381, 0.0
          %383 = vst.msk [vmem:[#allocation3 + $0x1] sm:$0x1] %vm381, 0.0
          %384 = vst.msk [vmem:[#allocation3 + $0x2] sm:$0x1] %vm381, 0.0
          %385 = vst.msk [vmem:[#allocation3 + $0x3] sm:$0x1] %vm381, 0.0
          %vm386 = vcmask 0
          %387 = vst.msk [vmem:[#allocation4] sm:$0x1] %vm386, -inf
          %388 = vst.msk [vmem:[#allocation4 + $0x1] sm:$0x1] %vm386, -inf
          %389 = vst.msk [vmem:[#allocation4 + $0x2] sm:$0x1] %vm386, -inf
          %390 = vst.msk [vmem:[#allocation4 + $0x3] sm:$0x1] %vm386, -inf
        $region52: #{tpu_custom_call.1} parent=35 // pred_fallthru
          _
        %p391 = scmp.lt.s32.totalorder %s29, 1
        // Predicated region
        $region53: #{tpu_custom_call.1} parent=35 // pred_check
          %p392 = pneg %p391
        $region54: #{tpu_custom_call.1} parent=35 // pred_check_branch
          %394 = sbr.rel (%p392) target = $region56
        $region55: #{tpu_custom_call.1} parent=35 // pred_region
          %v395 = vld [vmem:[%s299] sm:$0xf]
          %v396 = vld [vmem:[%s299 + $0x4] sm:$0xf]
          %v397 = vld [vmem:[%s299 + $0x8] sm:$0xf]
          %v398 = vld [vmem:[%s299 + $0xc] sm:$0xf]
          %v403 = vunpack.c.l.b16 %v395
          %v404 = vunpack.c.l.b16 %v396
          %v405 = vunpack.c.l.b16 %v397
          %v406 = vunpack.c.l.b16 %v398
          %v407 = vpack.c.b16 %v404, %v403
          %v408 = vpack.c.b16 %v406, %v405
          %v411 = vunpack.c.l.b16 %v358
          %v412 = vunpack.c.l.b16 %v359
          %v413 = vpack.c.b16 %v412, %v411
          %vm415 = vcmask 130048
          %v417 = vsel %vm415, %v407, 0
          %v420 = vsel %vm415, %v408, 0
          %422 = vmatprep.subr.bf16.mxu0 0
          %423 = vmatpush1.bf16.msra.mxu0 %v413
          %424 = vmatprep.subr.bf16.mxu0 0
          %425 = vmatpush1.bf16.msra.mxu0 0
          %426 = vmatprep.subr.bf16.mxu0 0
          %427 = vmatpush1.bf16.msra.mxu0 0
          %428 = vmatprep.subr.bf16.mxu0 0
          %429 = vmatpush1.bf16.msra.mxu0 0
          %430 = vmatprep.subr.bf16.mxu0 0
          %431 = vmatpush1.bf16.msra.mxu0 0
          %432 = vmatprep.subr.bf16.mxu0 0
          %433 = vmatpush1.bf16.msra.mxu0 0
          %434 = vmatprep.subr.bf16.mxu0 0
          %435 = vmatpush1.bf16.msra.mxu0 0
          %436 = vmatprep.subr.bf16.mxu0 0
          %437 = vmatpush1.bf16.msra.mxu0 0
          %438 = vmatprep.subr.bf16.mxu0 0
          %439 = vmatpush1.bf16.msra.mxu0 0
          %440 = vmatprep.subr.bf16.mxu0 0
          %441 = vmatpush1.bf16.msra.mxu0 0
          %442 = vmatprep.subr.bf16.mxu0 0
          %443 = vmatpush1.bf16.msra.mxu0 0
          %444 = vmatprep.subr.bf16.mxu0 0
          %445 = vmatpush1.bf16.msra.mxu0 0
          %446 = vmatprep.subr.bf16.mxu0 0
          %447 = vmatpush1.bf16.msra.mxu0 0
          %448 = vmatprep.subr.bf16.mxu0 0
          %449 = vmatpush1.bf16.msra.mxu0 0
          %450 = vmatprep.subr.bf16.mxu0 0
          %451 = vmatpush1.bf16.msra.mxu0 0
          %452 = vmatprep.subr.bf16.mxu0 0
          %453 = vmatpush1.bf16.msra.mxu0 0
          %454 = vmatprep.mubr.bf16.mxu0 0
          %455 = vmatmul.mubr.bf16.gmra.mrb[0].mxu0 %v417
          %v456 = vpop.f32.mrb[0].mxu0
          %v457 = vadd.f32 0.0, %v456
          %v458 = vpop.f32.mrb[0].mxu0
          %v459 = vpop.f32.mrb[0].mxu0
          %v460 = vadd.f32 0.0, %v459
          %v461 = vpop.f32.mrb[0].mxu0
          %462 = vmatprep.mubr.bf16.mxu0 0
          %463 = vmatmul.mubr.bf16.gmra.mrb[0].mxu0 %v420
          %v464 = vpop.f32.mrb[0].mxu0
          %v465 = vadd.f32 0.0, %v464
          %v466 = vpop.f32.mrb[0].mxu0
          %v467 = vpop.f32.mrb[0].mxu0
          %v468 = vadd.f32 0.0, %v467
          %v469 = vpop.f32.mrb[0].mxu0
          %470 = vdwg.mxu0
          %v471 = vunpack.c.l.bf16 %v395
          %v472 = vunpack.c.l.bf16 %v396
          %v473 = vunpack.c.l.bf16 %v397
          %v474 = vunpack.c.l.bf16 %v398
          %v475 = vmul.f32 %v471, %v471
          %v476 = vmul.f32 %v472, %v472
          %v477 = vmul.f32 %v473, %v473
          %v478 = vmul.f32 %v474, %v474
          %v479 = vsel %vm415, %v475, 0.0
          %480 = vadd.xlane.f32.xlu0 %v479
          %v481 = vpop.xlane.xlu0 %480
          %v482 = vsel %vm415, %v476, 0.0
          %483 = vadd.xlane.f32.xlu0 %v482
          %v484 = vpop.xlane.xlu0 %483
          %v485 = vsel %vm415, %v477, 0.0
          %486 = vadd.xlane.f32.xlu0 %v485
          %v487 = vpop.xlane.xlu0 %486
          %v488 = vsel %vm415, %v478, 0.0
          %489 = vadd.xlane.f32.xlu0 %v488
          %v490 = vpop.xlane.xlu0 %489
          %v491 = vmul.f32 %v481, 0.125
          %v492 = vmul.f32 %v484, 0.125
          %v493 = vmul.f32 %v487, 0.125
          %v494 = vmul.f32 %v490, 0.125
          %v495 = vsub.f32 %v457, %v491
          %v496 = vsub.f32 %v460, %v492
          %v497 = vsub.f32 %v465, %v493
          %v498 = vsub.f32 %v468, %v494
          %v499 = vld [vmem:[%s308] sm:$0xf]
          %v500 = vld [vmem:[%s308 + $0x4] sm:$0xf]
          %v501 = vld [vmem:[%s308 + $0x8] sm:$0xf]
          %v502 = vld [vmem:[%s308 + $0xc] sm:$0xf]
          %v505 = vsel %vm415, %v499, 1065369472
          %v508 = vsel %vm415, %v500, 1065369472
          %v511 = vsel %vm415, %v501, 1065369472
          %v514 = vsel %vm415, %v502, 1065369472
          %v516 = vld [vmem:[#allocation4] sm:$0x1]
          %vm517 = vcmask 261120
          %v518 = vsel %vm517, %v495, -inf
          %519 = vmax.xlane.f32.xlu0 %v518
          %v520 = vpop.xlane.xlu0 %519
          %v521 = vrot.slane %v520, 4
          %v522 = vmax.f32 %v520, %v521
          %v523 = vrot.slane %v522, 2
          %v524 = vmax.f32 %v522, %v523
          %v525 = vrot.slane %v524, 1
          %v526 = vmax.f32 %v524, %v525
          %s527 = vtos %v526
          %v528 = vstv %s527
          %v529 = vmax.f32 %v516, %v528
          %v530 = vsub.f32 %v516, %v529
          %v531 = vmul.f32 %v530, 1.442695
          %v532 = vpow.pop %v531
          %v534 = vlaneseq
          %v535 = vshrl.u32 %v534, 7
          %v536 = vsub.s32 0, %v535
          %v537 = vrot.slane %v529, %v536
          %538 = vset.pattern.permute.xlu0 0
          %539 = vperm.xlu0 %538, %v537
          %v540 = vpop.permute.xlu0 %539
          %v542 = vsub.f32 %v495, %v540
          %v543 = vmul.f32 %v542, 1.442695
          %v544 = vpow.pop %v543
          %v545 = vpack.c.bf16 %v544, %v544
          %546 = vxpose.xlu0.c.b16.start [1/8] %v545, 128
          %547 = vxpose.xlu0.c.b16.cont [2/8] 0, 128
          %548 = vxpose.xlu0.c.b16.cont [3/8] 0, 128
          %549 = vxpose.xlu0.c.b16.cont [4/8] 0, 128
          %550 = vxpose.xlu0.c.b16.cont [5/8] 0, 128
          %551 = vxpose.xlu0.c.b16.cont [6/8] 0, 128
          %552 = vxpose.xlu0.c.b16.cont [7/8] 0, 128
          %553 = vxpose.xlu0.c.b16.end [8/8] 0, 128
          %v554 = vpop.trf.xlu0
          %v555 = vpop.trf.xlu0
          %v556 = vpop.trf.xlu0
          %v557 = vpop.trf.xlu0
          %v558 = vpop.trf.xlu0
          %v559 = vpop.trf.xlu0
          %v560 = vpop.trf.xlu0
          %v561 = vpop.trf.xlu0
          %vm562 = vcmask 64512
          %v564 = vsel %vm562, %v554, 0
          %v567 = vsel %vm562, %v555, 0
          %vm569 = vcmask 1043456
          %v570 = vsel %vm569, %v505, 0
          %572 = vmatprep.subr.bf16.mxu0 0
          %573 = vmatpush1.bf16.msra.mxu0 %v570
          %574 = vmatprep.subr.bf16.mxu0 0
          %575 = vmatpush1.bf16.msra.mxu0 0
          %576 = vmatprep.subr.bf16.mxu0 0
          %577 = vmatpush1.bf16.msra.mxu0 0
          %578 = vmatprep.subr.bf16.mxu0 0
          %579 = vmatpush1.bf16.msra.mxu0 0
          %580 = vmatprep.subr.bf16.mxu0 0
          %581 = vmatpush1.bf16.msra.mxu0 0
          %582 = vmatprep.subr.bf16.mxu0 0
          %583 = vmatpush1.bf16.msra.mxu0 0
          %584 = vmatprep.subr.bf16.mxu0 0
          %585 = vmatpush1.bf16.msra.mxu0 0
          %586 = vmatprep.subr.bf16.mxu0 0
          %587 = vmatpush1.bf16.msra.mxu0 0
          %588 = vmatprep.subr.bf16.mxu0 0
          %589 = vmatpush1.bf16.msra.mxu0 0
          %590 = vmatprep.subr.bf16.mxu0 0
          %591 = vmatpush1.bf16.msra.mxu0 0
          %592 = vmatprep.subr.bf16.mxu0 0
          %593 = vmatpush1.bf16.msra.mxu0 0
          %594 = vmatprep.subr.bf16.mxu0 0
          %595 = vmatpush1.bf16.msra.mxu0 0
          %596 = vmatprep.subr.bf16.mxu0 0
          %597 = vmatpush1.bf16.msra.mxu0 0
          %598 = vmatprep.subr.bf16.mxu0 0
          %599 = vmatpush1.bf16.msra.mxu0 0
          %600 = vmatprep.subr.bf16.mxu0 0
          %601 = vmatpush1.bf16.msra.mxu0 0
          %602 = vmatprep.subr.bf16.mxu0 0
          %603 = vmatpush1.bf16.msra.mxu0 0
          %604 = vmatprep.mubr.bf16.mxu0 0
          %605 = vmatmul.mubr.bf16.gmra.mrb[0].mxu0 %v564
          %v606 = vpop.f32.mrb[0].mxu0
          %v607 = vadd.f32 0.0, %v606
          %v608 = vpop.f32.mrb[0].mxu0
          %v609 = vpop.f32.mrb[0].mxu0
          %v610 = vadd.f32 0.0, %v609
          %v611 = vpop.f32.mrb[0].mxu0
          %612 = vmatprep.mubr.bf16.mxu0 0
          %613 = vmatmul.mubr.bf16.gmra.mrb[0].mxu0 %v567
          %v614 = vpop.f32.mrb[0].mxu0
          %v615 = vadd.f32 0.0, %v614
          %v616 = vpop.f32.mrb[0].mxu0
          %v617 = vpop.f32.mrb[0].mxu0
          %v618 = vadd.f32 0.0, %v617
          %v619 = vpop.f32.mrb[0].mxu0
          %620 = vdwg.mxu0
          %v621 = vld [vmem:[#allocation2] sm:$0xff]
          %v622 = vld [vmem:[#allocation2 + $0x8] sm:$0xff]
          %v623 = vld [vmem:[#allocation2 + $0x10] sm:$0xff]
          %v624 = vld [vmem:[#allocation2 + $0x18] sm:$0xff]
          %v626 = vlaneseq
          %v627 = vshrl.u32 %v626, 7
          %v628 = vsub.s32 0, %v627
          %v629 = vrot.slane %v532, %v628
          %630 = vset.pattern.permute.xlu0 0
          %631 = vperm.xlu0 %630, %v629
          %v632 = vpop.permute.xlu0 %631
          %v634 = vmul.f32 %v621, %v632
          %v635 = vmul.f32 %v622, %v632
          %v636 = vmul.f32 %v623, %v632
          %v637 = vmul.f32 %v624, %v632
          %v638 = vadd.f32 %v634, %v607
          %v639 = vadd.f32 %v635, %v610
          %v640 = vadd.f32 %v636, %v615
          %v641 = vadd.f32 %v637, %v618
          %vm642 = vcmask 138240
          %643 = vst.msk [vmem:[#allocation2] sm:$0xff] %vm642, %v638
          %644 = vst.msk [vmem:[#allocation2 + $0x8] sm:$0xff] %vm642, %v639
          %645 = vst.msk [vmem:[#allocation2 + $0x10] sm:$0xff] %vm642, %v640
          %646 = vst.msk [vmem:[#allocation2 + $0x18] sm:$0xff] %vm642, %v641
          %v647 = vld [vmem:[#allocation3] sm:$0x1]
          %v648 = vunpack.c.l.bf16 %v505
          %v649 = vsel %vm642, %v648, 0.0
          %v650 = vrot.slane %v649, 4
          %v651 = vadd.f32 %v649, %v650
          %v652 = vrot.slane %v651, 2
          %v653 = vadd.f32 %v651, %v652
          %v654 = vrot.slane %v653, 1
          %v655 = vadd.f32 %v653, %v654
          %v656 = vadd.f32 %v647, %v655
          %vm657 = vcmask 131072
          %658 = vst.msk [vmem:[#allocation3] sm:$0x1] %vm657, %v656
          %vm659 = vcmask 0
          %660 = vst.msk [vmem:[#allocation4] sm:$0x1] %vm659, %v529
          %s661 = scalar_lea.vmem [#allocation4], 1
          %v662 = vld [vmem:[%s661] sm:$0x1]
          %v663 = vsel %vm517, %v496, -inf
          %664 = vmax.xlane.f32.xlu0 %v663
          %v665 = vpop.xlane.xlu0 %664
          %v666 = vrot.slane %v665, 4
          %v667 = vmax.f32 %v665, %v666
          %v668 = vrot.slane %v667, 2
          %v669 = vmax.f32 %v667, %v668
          %v670 = vrot.slane %v669, 1
          %v671 = vmax.f32 %v669, %v670
          %s672 = vtos %v671
          %v673 = vstv %s672
          %v674 = vmax.f32 %v662, %v673
          %v675 = vsub.f32 %v662, %v674
          %v676 = vmul.f32 %v675, 1.442695
          %v677 = vpow.pop %v676
          %v679 = vlaneseq
          %v680 = vshrl.u32 %v679, 7
          %v681 = vsub.s32 0, %v680
          %v682 = vrot.slane %v674, %v681
          %683 = vset.pattern.permute.xlu0 0
          %684 = vperm.xlu0 %683, %v682
          %v685 = vpop.permute.xlu0 %684
          %v687 = vsub.f32 %v496, %v685
          %v688 = vmul.f32 %v687, 1.442695
          %v689 = vpow.pop %v688
          %v690 = vpack.c.bf16 %v689, %v689
          %691 = vxpose.xlu0.c.b16.start [1/8] %v690, 128
          %692 = vxpose.xlu0.c.b16.cont [2/8] 0, 128
          %693 = vxpose.xlu0.c.b16.cont [3/8] 0, 128
          %694 = vxpose.xlu0.c.b16.cont [4/8] 0, 128
          %695 = vxpose.xlu0.c.b16.cont [5/8] 0, 128
          %696 = vxpose.xlu0.c.b16.cont [6/8] 0, 128
          %697 = vxpose.xlu0.c.b16.cont [7/8] 0, 128
          %698 = vxpose.xlu0.c.b16.end [8/8] 0, 128
          %v699 = vpop.trf.xlu0
          %v700 = vpop.trf.xlu0
          %v701 = vpop.trf.xlu0
          %v702 = vpop.trf.xlu0
          %v703 = vpop.trf.xlu0
          %v704 = vpop.trf.xlu0
          %v705 = vpop.trf.xlu0
          %v706 = vpop.trf.xlu0
          %v708 = vsel %vm562, %v699, 0
          %v711 = vsel %vm562, %v700, 0
          %v713 = vsel %vm569, %v508, 0
          %715 = vmatprep.subr.bf16.mxu0 0
          %716 = vmatpush1.bf16.msra.mxu0 %v713
          %717 = vmatprep.subr.bf16.mxu0 0
          %718 = vmatpush1.bf16.msra.mxu0 0
          %719 = vmatprep.subr.bf16.mxu0 0
          %720 = vmatpush1.bf16.msra.mxu0 0
          %721 = vmatprep.subr.bf16.mxu0 0
          %722 = vmatpush1.bf16.msra.mxu0 0
          %723 = vmatprep.subr.bf16.mxu0 0
          %724 = vmatpush1.bf16.msra.mxu0 0
          %725 = vmatprep.subr.bf16.mxu0 0
          %726 = vmatpush1.bf16.msra.mxu0 0
          %727 = vmatprep.subr.bf16.mxu0 0
          %728 = vmatpush1.bf16.msra.mxu0 0
          %729 = vmatprep.subr.bf16.mxu0 0
          %730 = vmatpush1.bf16.msra.mxu0 0
          %731 = vmatprep.subr.bf16.mxu0 0
          %732 = vmatpush1.bf16.msra.mxu0 0
          %733 = vmatprep.subr.bf16.mxu0 0
          %734 = vmatpush1.bf16.msra.mxu0 0
          %735 = vmatprep.subr.bf16.mxu0 0
          %736 = vmatpush1.bf16.msra.mxu0 0
          %737 = vmatprep.subr.bf16.mxu0 0
          %738 = vmatpush1.bf16.msra.mxu0 0
          %739 = vmatprep.subr.bf16.mxu0 0
          %740 = vmatpush1.bf16.msra.mxu0 0
          %741 = vmatprep.subr.bf16.mxu0 0
          %742 = vmatpush1.bf16.msra.mxu0 0
          %743 = vmatprep.subr.bf16.mxu0 0
          %744 = vmatpush1.bf16.msra.mxu0 0
          %745 = vmatprep.subr.bf16.mxu0 0
          %746 = vmatpush1.bf16.msra.mxu0 0
          %747 = vmatprep.mubr.bf16.mxu0 0
          %748 = vmatmul.mubr.bf16.gmra.mrb[0].mxu0 %v708
          %v749 = vpop.f32.mrb[0].mxu0
          %v750 = vadd.f32 0.0, %v749
          %v751 = vpop.f32.mrb[0].mxu0
          %v752 = vpop.f32.mrb[0].mxu0
          %v753 = vadd.f32 0.0, %v752
          %v754 = vpop.f32.mrb[0].mxu0
          %755 = vmatprep.mubr.bf16.mxu0 0
          %756 = vmatmul.mubr.bf16.gmra.mrb[0].mxu0 %v711
          %v757 = vpop.f32.mrb[0].mxu0
          %v758 = vadd.f32 0.0, %v757
          %v759 = vpop.f32.mrb[0].mxu0
          %v760 = vpop.f32.mrb[0].mxu0
          %v761 = vadd.f32 0.0, %v760
          %v762 = vpop.f32.mrb[0].mxu0
          %763 = vdwg.mxu0
          %s764 = scalar_lea.vmem [#allocation2], 32
          %v765 = vld [vmem:[%s764] sm:$0xff]
          %v766 = vld [vmem:[%s764 + $0x8] sm:$0xff]
          %v767 = vld [vmem:[%s764 + $0x10] sm:$0xff]
          %v768 = vld [vmem:[%s764 + $0x18] sm:$0xff]
          %v770 = vlaneseq
          %v771 = vshrl.u32 %v770, 7
          %v772 = vsub.s32 0, %v771
          %v773 = vrot.slane %v677, %v772
          %774 = vset.pattern.permute.xlu0 0
          %775 = vperm.xlu0 %774, %v773
          %v776 = vpop.permute.xlu0 %775
          %v778 = vmul.f32 %v765, %v776
          %v779 = vmul.f32 %v766, %v776
          %v780 = vmul.f32 %v767, %v776
          %v781 = vmul.f32 %v768, %v776
          %v782 = vadd.f32 %v778, %v750
          %v783 = vadd.f32 %v779, %v753
          %v784 = vadd.f32 %v780, %v758
          %v785 = vadd.f32 %v781, %v761
          %786 = vst.msk [vmem:[%s764] sm:$0xff] %vm642, %v782
          %787 = vst.msk [vmem:[%s764 + $0x8] sm:$0xff] %vm642, %v783
          %788 = vst.msk [vmem:[%s764 + $0x10] sm:$0xff] %vm642, %v784
          %789 = vst.msk [vmem:[%s764 + $0x18] sm:$0xff] %vm642, %v785
          %s790 = scalar_lea.vmem [#allocation3], 1
          %v791 = vld [vmem:[%s790] sm:$0x1]
          %v792 = vunpack.c.l.bf16 %v508
          %v793 = vsel %vm642, %v792, 0.0
          %v794 = vrot.slane %v793, 4
          %v795 = vadd.f32 %v793, %v794
          %v796 = vrot.slane %v795, 2
          %v797 = vadd.f32 %v795, %v796
          %v798 = vrot.slane %v797, 1
          %v799 = vadd.f32 %v797, %v798
          %v800 = vadd.f32 %v791, %v799
          %801 = vst.msk [vmem:[%s790] sm:$0x1] %vm657, %v800
          %802 = vst.msk [vmem:[%s661] sm:$0x1] %vm659, %v674
          %s803 = scalar_lea.vmem [#allocation4], 2
          %v804 = vld [vmem:[%s803] sm:$0x1]
          %v805 = vsel %vm517, %v497, -inf
          %806 = vmax.xlane.f32.xlu0 %v805
          %v807 = vpop.xlane.xlu0 %806
          %v808 = vrot.slane %v807, 4
          %v809 = vmax.f32 %v807, %v808
          %v810 = vrot.slane %v809, 2
          %v811 = vmax.f32 %v809, %v810
          %v812 = vrot.slane %v811, 1
          %v813 = vmax.f32 %v811, %v812
          %s814 = vtos %v813
          %v815 = vstv %s814
          %v816 = vmax.f32 %v804, %v815
          %v817 = vsub.f32 %v804, %v816
          %v818 = vmul.f32 %v817, 1.442695
          %v819 = vpow.pop %v818
          %v821 = vlaneseq
          %v822 = vshrl.u32 %v821, 7
          %v823 = vsub.s32 0, %v822
          %v824 = vrot.slane %v816, %v823
          %825 = vset.pattern.permute.xlu0 0
          %826 = vperm.xlu0 %825, %v824
          %v827 = vpop.permute.xlu0 %826
          %v829 = vsub.f32 %v497, %v827
          %v830 = vmul.f32 %v829, 1.442695
          %v831 = vpow.pop %v830
          %v832 = vpack.c.bf16 %v831, %v831
          %833 = vxpose.xlu0.c.b16.start [1/8] %v832, 128
          %834 = vxpose.xlu0.c.b16.cont [2/8] 0, 128
          %835 = vxpose.xlu0.c.b16.cont [3/8] 0, 128
          %836 = vxpose.xlu0.c.b16.cont [4/8] 0, 128
          %837 = vxpose.xlu0.c.b16.cont [5/8] 0, 128
          %838 = vxpose.xlu0.c.b16.cont [6/8] 0, 128
          %839 = vxpose.xlu0.c.b16.cont [7/8] 0, 128
          %840 = vxpose.xlu0.c.b16.end [8/8] 0, 128
          %v841 = vpop.trf.xlu0
          %v842 = vpop.trf.xlu0
          %v843 = vpop.trf.xlu0
          %v844 = vpop.trf.xlu0
          %v845 = vpop.trf.xlu0
          %v846 = vpop.trf.xlu0
          %v847 = vpop.trf.xlu0
          %v848 = vpop.trf.xlu0
          %v850 = vsel %vm562, %v841, 0
          %v853 = vsel %vm562, %v842, 0
          %v855 = vsel %vm569, %v511, 0
          %857 = vmatprep.subr.bf16.mxu0 0
          %858 = vmatpush1.bf16.msra.mxu0 %v855
          %859 = vmatprep.subr.bf16.mxu0 0
          %860 = vmatpush1.bf16.msra.mxu0 0
          %861 = vmatprep.subr.bf16.mxu0 0
          %862 = vmatpush1.bf16.msra.mxu0 0
          %863 = vmatprep.subr.bf16.mxu0 0
          %864 = vmatpush1.bf16.msra.mxu0 0
          %865 = vmatprep.subr.bf16.mxu0 0
          %866 = vmatpush1.bf16.msra.mxu0 0
          %867 = vmatprep.subr.bf16.mxu0 0
          %868 = vmatpush1.bf16.msra.mxu0 0
          %869 = vmatprep.subr.bf16.mxu0 0
          %870 = vmatpush1.bf16.msra.mxu0 0
          %871 = vmatprep.subr.bf16.mxu0 0
          %872 = vmatpush1.bf16.msra.mxu0 0
          %873 = vmatprep.subr.bf16.mxu0 0
          %874 = vmatpush1.bf16.msra.mxu0 0
          %875 = vmatprep.subr.bf16.mxu0 0
          %876 = vmatpush1.bf16.msra.mxu0 0
          %877 = vmatprep.subr.bf16.mxu0 0
          %878 = vmatpush1.bf16.msra.mxu0 0
          %879 = vmatprep.subr.bf16.mxu0 0
          %880 = vmatpush1.bf16.msra.mxu0 0
          %881 = vmatprep.subr.bf16.mxu0 0
          %882 = vmatpush1.bf16.msra.mxu0 0
          %883 = vmatprep.subr.bf16.mxu0 0
          %884 = vmatpush1.bf16.msra.mxu0 0
          %885 = vmatprep.subr.bf16.mxu0 0
          %886 = vmatpush1.bf16.msra.mxu0 0
          %887 = vmatprep.subr.bf16.mxu0 0
          %888 = vmatpush1.bf16.msra.mxu0 0
          %889 = vmatprep.mubr.bf16.mxu0 0
          %890 = vmatmul.mubr.bf16.gmra.mrb[0].mxu0 %v850
          %v891 = vpop.f32.mrb[0].mxu0
          %v892 = vadd.f32 0.0, %v891
          %v893 = vpop.f32.mrb[0].mxu0
          %v894 = vpop.f32.mrb[0].mxu0
          %v895 = vadd.f32 0.0, %v894
          %v896 = vpop.f32.mrb[0].mxu0
          %897 = vmatprep.mubr.bf16.mxu0 0
          %898 = vmatmul.mubr.bf16.gmra.mrb[0].mxu0 %v853
          %v899 = vpop.f32.mrb[0].mxu0
          %v900 = vadd.f32 0.0, %v899
          %v901 = vpop.f32.mrb[0].mxu0
          %v902 = vpop.f32.mrb[0].mxu0
          %v903 = vadd.f32 0.0, %v902
          %v904 = vpop.f32.mrb[0].mxu0
          %905 = vdwg.mxu0
          %s906 = scalar_lea.vmem [#allocation2], 64
          %v907 = vld [vmem:[%s906] sm:$0xff]
          %v908 = vld [vmem:[%s906 + $0x8] sm:$0xff]
          %v909 = vld [vmem:[%s906 + $0x10] sm:$0xff]
          %v910 = vld [vmem:[%s906 + $0x18] sm:$0xff]
          %v912 = vlaneseq
          %v913 = vshrl.u32 %v912, 7
          %v914 = vsub.s32 0, %v913
          %v915 = vrot.slane %v819, %v914
          %916 = vset.pattern.permute.xlu0 0
          %917 = vperm.xlu0 %916, %v915
          %v918 = vpop.permute.xlu0 %917
          %v920 = vmul.f32 %v907, %v918
          %v921 = vmul.f32 %v908, %v918
          %v922 = vmul.f32 %v909, %v918
          %v923 = vmul.f32 %v910, %v918
          %v924 = vadd.f32 %v920, %v892
          %v925 = vadd.f32 %v921, %v895
          %v926 = vadd.f32 %v922, %v900
          %v927 = vadd.f32 %v923, %v903
          %928 = vst.msk [vmem:[%s906] sm:$0xff] %vm642, %v924
          %929 = vst.msk [vmem:[%s906 + $0x8] sm:$0xff] %vm642, %v925
          %930 = vst.msk [vmem:[%s906 + $0x10] sm:$0xff] %vm642, %v926
          %931 = vst.msk [vmem:[%s906 + $0x18] sm:$0xff] %vm642, %v927
          %s932 = scalar_lea.vmem [#allocation3], 2
          %v933 = vld [vmem:[%s932] sm:$0x1]
          %v934 = vunpack.c.l.bf16 %v511
          %v935 = vsel %vm642, %v934, 0.0
          %v936 = vrot.slane %v935, 4
          %v937 = vadd.f32 %v935, %v936
          %v938 = vrot.slane %v937, 2
          %v939 = vadd.f32 %v937, %v938
          %v940 = vrot.slane %v939, 1
          %v941 = vadd.f32 %v939, %v940
          %v942 = vadd.f32 %v933, %v941
          %943 = vst.msk [vmem:[%s932] sm:$0x1] %vm657, %v942
          %944 = vst.msk [vmem:[%s803] sm:$0x1] %vm659, %v816
          %s945 = scalar_lea.vmem [#allocation4], 3
          %v946 = vld [vmem:[%s945] sm:$0x1]
          %v947 = vsel %vm517, %v498, -inf
          %948 = vmax.xlane.f32.xlu0 %v947
          %v949 = vpop.xlane.xlu0 %948
          %v950 = vrot.slane %v949, 4
          %v951 = vmax.f32 %v949, %v950
          %v952 = vrot.slane %v951, 2
          %v953 = vmax.f32 %v951, %v952
          %v954 = vrot.slane %v953, 1
          %v955 = vmax.f32 %v953, %v954
          %s956 = vtos %v955
          %v957 = vstv %s956
          %v958 = vmax.f32 %v946, %v957
          %v959 = vsub.f32 %v946, %v958
          %v960 = vmul.f32 %v959, 1.442695
          %v961 = vpow.pop %v960
          %v963 = vlaneseq
          %v964 = vshrl.u32 %v963, 7
          %v965 = vsub.s32 0, %v964
          %v966 = vrot.slane %v958, %v965
          %967 = vset.pattern.permute.xlu0 0
          %968 = vperm.xlu0 %967, %v966
          %v969 = vpop.permute.xlu0 %968
          %v971 = vsub.f32 %v498, %v969
          %v972 = vmul.f32 %v971, 1.442695
          %v973 = vpow.pop %v972
          %v974 = vpack.c.bf16 %v973, %v973
          %975 = vxpose.xlu0.c.b16.start [1/8] %v974, 128
          %976 = vxpose.xlu0.c.b16.cont [2/8] 0, 128
          %977 = vxpose.xlu0.c.b16.cont [3/8] 0, 128
          %978 = vxpose.xlu0.c.b16.cont [4/8] 0, 128
          %979 = vxpose.xlu0.c.b16.cont [5/8] 0, 128
          %980 = vxpose.xlu0.c.b16.cont [6/8] 0, 128
          %981 = vxpose.xlu0.c.b16.cont [7/8] 0, 128
          %982 = vxpose.xlu0.c.b16.end [8/8] 0, 128
          %v983 = vpop.trf.xlu0
          %v984 = vpop.trf.xlu0
          %v985 = vpop.trf.xlu0
          %v986 = vpop.trf.xlu0
          %v987 = vpop.trf.xlu0
          %v988 = vpop.trf.xlu0
          %v989 = vpop.trf.xlu0
          %v990 = vpop.trf.xlu0
          %v992 = vsel %vm562, %v983, 0
          %v995 = vsel %vm562, %v984, 0
          %v997 = vsel %vm569, %v514, 0
          %999 = vmatprep.subr.bf16.mxu0 0
          %1000 = vmatpush1.bf16.msra.mxu0 %v997
          %1001 = vmatprep.subr.bf16.mxu0 0
          %1002 = vmatpush1.bf16.msra.mxu0 0
          %1003 = vmatprep.subr.bf16.mxu0 0
          %1004 = vmatpush1.bf16.msra.mxu0 0
          %1005 = vmatprep.subr.bf16.mxu0 0
          %1006 = vmatpush1.bf16.msra.mxu0 0
          %1007 = vmatprep.subr.bf16.mxu0 0
          %1008 = vmatpush1.bf16.msra.mxu0 0
          %1009 = vmatprep.subr.bf16.mxu0 0
          %1010 = vmatpush1.bf16.msra.mxu0 0
          %1011 = vmatprep.subr.bf16.mxu0 0
          %1012 = vmatpush1.bf16.msra.mxu0 0
          %1013 = vmatprep.subr.bf16.mxu0 0
          %1014 = vmatpush1.bf16.msra.mxu0 0
          %1015 = vmatprep.subr.bf16.mxu0 0
          %1016 = vmatpush1.bf16.msra.mxu0 0
          %1017 = vmatprep.subr.bf16.mxu0 0
          %1018 = vmatpush1.bf16.msra.mxu0 0
          %1019 = vmatprep.subr.bf16.mxu0 0
          %1020 = vmatpush1.bf16.msra.mxu0 0
          %1021 = vmatprep.subr.bf16.mxu0 0
          %1022 = vmatpush1.bf16.msra.mxu0 0
          %1023 = vmatprep.subr.bf16.mxu0 0
          %1024 = vmatpush1.bf16.msra.mxu0 0
          %1025 = vmatprep.subr.bf16.mxu0 0
          %1026 = vmatpush1.bf16.msra.mxu0 0
          %1027 = vmatprep.subr.bf16.mxu0 0
          %1028 = vmatpush1.bf16.msra.mxu0 0
          %1029 = vmatprep.subr.bf16.mxu0 0
          %1030 = vmatpush1.bf16.msra.mxu0 0
          %1031 = vmatprep.mubr.bf16.mxu0 0
          %1032 = vmatmul.mubr.bf16.gmra.mrb[0].mxu0 %v992
          %v1033 = vpop.f32.mrb[0].mxu0
          %v1034 = vadd.f32 0.0, %v1033
          %v1035 = vpop.f32.mrb[0].mxu0
          %v1036 = vpop.f32.mrb[0].mxu0
          %v1037 = vadd.f32 0.0, %v1036
          %v1038 = vpop.f32.mrb[0].mxu0
          %1039 = vmatprep.mubr.bf16.mxu0 0
          %1040 = vmatmul.mubr.bf16.gmra.mrb[0].mxu0 %v995
          %v1041 = vpop.f32.mrb[0].mxu0
          %v1042 = vadd.f32 0.0, %v1041
          %v1043 = vpop.f32.mrb[0].mxu0
          %v1044 = vpop.f32.mrb[0].mxu0
          %v1045 = vadd.f32 0.0, %v1044
          %v1046 = vpop.f32.mrb[0].mxu0
          %1047 = vdwg.mxu0
          %s1048 = scalar_lea.vmem [#allocation2], 96
          %v1049 = vld [vmem:[%s1048] sm:$0xff]
          %v1050 = vld [vmem:[%s1048 + $0x8] sm:$0xff]
          %v1051 = vld [vmem:[%s1048 + $0x10] sm:$0xff]
          %v1052 = vld [vmem:[%s1048 + $0x18] sm:$0xff]
          %v1054 = vlaneseq
          %v1055 = vshrl.u32 %v1054, 7
          %v1056 = vsub.s32 0, %v1055
          %v1057 = vrot.slane %v961, %v1056
          %1058 = vset.pattern.permute.xlu0 0
          %1059 = vperm.xlu0 %1058, %v1057
          %v1060 = vpop.permute.xlu0 %1059
          %v1062 = vmul.f32 %v1049, %v1060
          %v1063 = vmul.f32 %v1050, %v1060
          %v1064 = vmul.f32 %v1051, %v1060
          %v1065 = vmul.f32 %v1052, %v1060
          %v1066 = vadd.f32 %v1062, %v1034
          %v1067 = vadd.f32 %v1063, %v1037
          %v1068 = vadd.f32 %v1064, %v1042
          %v1069 = vadd.f32 %v1065, %v1045
          %1070 = vst.msk [vmem:[%s1048] sm:$0xff] %vm642, %v1066
          %1071 = vst.msk [vmem:[%s1048 + $0x8] sm:$0xff] %vm642, %v1067
          %1072 = vst.msk [vmem:[%s1048 + $0x10] sm:$0xff] %vm642, %v1068
          %1073 = vst.msk [vmem:[%s1048 + $0x18] sm:$0xff] %vm642, %v1069
          %s1074 = scalar_lea.vmem [#allocation3], 3
          %v1075 = vld [vmem:[%s1074] sm:$0x1]
          %v1076 = vunpack.c.l.bf16 %v514
          %v1077 = vsel %vm642, %v1076, 0.0
          %v1078 = vrot.slane %v1077, 4
          %v1079 = vadd.f32 %v1077, %v1078
          %v1080 = vrot.slane %v1079, 2
          %v1081 = vadd.f32 %v1079, %v1080
          %v1082 = vrot.slane %v1081, 1
          %v1083 = vadd.f32 %v1081, %v1082
          %v1084 = vadd.f32 %v1075, %v1083
          %1085 = vst.msk [vmem:[%s1074] sm:$0x1] %vm657, %v1084
          %1086 = vst.msk [vmem:[%s945] sm:$0x1] %vm659, %v958
        $region56: #{tpu_custom_call.1} parent=35 // pred_fallthru
          _
        %p1087 = scmp.eq.s32.totalorder %s29, 1
        // Predicated region
        $region57: #{tpu_custom_call.1} parent=35 // pred_check
          %p1088 = pneg %p1087
        $region58: #{tpu_custom_call.1} parent=35 // pred_check_branch
          %1090 = sbr.rel (%p1088) target = $region60
        $region59: #{tpu_custom_call.1} parent=35 // pred_region
          %v1091 = vld [vmem:[#allocation2] sm:$0xff]
          %v1092 = vld [vmem:[#allocation2 + $0x8] sm:$0xff]
          %v1093 = vld [vmem:[#allocation2 + $0x10] sm:$0xff]
          %v1094 = vld [vmem:[#allocation2 + $0x18] sm:$0xff]
          %v1095 = vld [vmem:[#allocation3] sm:$0x1]
          %v1096 = vmul.f32 %v1095, 0.0001
          %v1098 = vlaneseq
          %v1099 = vshrl.u32 %v1098, 7
          %v1100 = vsub.s32 0, %v1099
          %v1101 = vrot.slane %v1096, %v1100
          %v1103 = vadd.f32 %v1091, %v1101
          %v1104 = vadd.f32 %v1092, %v1101
          %v1105 = vadd.f32 %v1093, %v1101
          %v1106 = vadd.f32 %v1094, %v1101
          %vm1107 = vcmask 138240
          %1108 = vst.msk [vmem:[#allocation2] sm:$0xff] %vm1107, %v1103
          %1109 = vst.msk [vmem:[#allocation2 + $0x8] sm:$0xff] %vm1107, %v1104
          %1110 = vst.msk [vmem:[#allocation2 + $0x10] sm:$0xff] %vm1107, %v1105
          %1111 = vst.msk [vmem:[#allocation2 + $0x18] sm:$0xff] %vm1107, %v1106
          %s1112 = scalar_lea.vmem [#allocation2], 32
          %v1113 = vld [vmem:[%s1112] sm:$0xff]
          %v1114 = vld [vmem:[%s1112 + $0x8] sm:$0xff]
          %v1115 = vld [vmem:[%s1112 + $0x10] sm:$0xff]
          %v1116 = vld [vmem:[%s1112 + $0x18] sm:$0xff]
          %s1117 = scalar_lea.vmem [#allocation3], 1
          %v1118 = vld [vmem:[%s1117] sm:$0x1]
          %v1119 = vmul.f32 %v1118, 0.0001
          %v1121 = vlaneseq
          %v1122 = vshrl.u32 %v1121, 7
          %v1123 = vsub.s32 0, %v1122
          %v1124 = vrot.slane %v1119, %v1123
          %v1126 = vadd.f32 %v1113, %v1124
          %v1127 = vadd.f32 %v1114, %v1124
          %v1128 = vadd.f32 %v1115, %v1124
          %v1129 = vadd.f32 %v1116, %v1124
          %1130 = vst.msk [vmem:[%s1112] sm:$0xff] %vm1107, %v1126
          %1131 = vst.msk [vmem:[%s1112 + $0x8] sm:$0xff] %vm1107, %v1127
          %1132 = vst.msk [vmem:[%s1112 + $0x10] sm:$0xff] %vm1107, %v1128
          %1133 = vst.msk [vmem:[%s1112 + $0x18] sm:$0xff] %vm1107, %v1129
          %s1134 = scalar_lea.vmem [#allocation2], 64
          %v1135 = vld [vmem:[%s1134] sm:$0xff]
          %v1136 = vld [vmem:[%s1134 + $0x8] sm:$0xff]
          %v1137 = vld [vmem:[%s1134 + $0x10] sm:$0xff]
          %v1138 = vld [vmem:[%s1134 + $0x18] sm:$0xff]
          %s1139 = scalar_lea.vmem [#allocation3], 2
          %v1140 = vld [vmem:[%s1139] sm:$0x1]
          %v1141 = vmul.f32 %v1140, 0.0001
          %v1143 = vlaneseq
          %v1144 = vshrl.u32 %v1143, 7
          %v1145 = vsub.s32 0, %v1144
          %v1146 = vrot.slane %v1141, %v1145
          %v1148 = vadd.f32 %v1135, %v1146
          %v1149 = vadd.f32 %v1136, %v1146
          %v1150 = vadd.f32 %v1137, %v1146
          %v1151 = vadd.f32 %v1138, %v1146
          %1152 = vst.msk [vmem:[%s1134] sm:$0xff] %vm1107, %v1148
          %1153 = vst.msk [vmem:[%s1134 + $0x8] sm:$0xff] %vm1107, %v1149
          %1154 = vst.msk [vmem:[%s1134 + $0x10] sm:$0xff] %vm1107, %v1150
          %1155 = vst.msk [vmem:[%s1134 + $0x18] sm:$0xff] %vm1107, %v1151
          %s1156 = scalar_lea.vmem [#allocation2], 96
          %v1157 = vld [vmem:[%s1156] sm:$0xff]
          %v1158 = vld [vmem:[%s1156 + $0x8] sm:$0xff]
          %v1159 = vld [vmem:[%s1156 + $0x10] sm:$0xff]
          %v1160 = vld [vmem:[%s1156 + $0x18] sm:$0xff]
          %s1161 = scalar_lea.vmem [#allocation3], 3
          %v1162 = vld [vmem:[%s1161] sm:$0x1]
          %v1163 = vmul.f32 %v1162, 0.0001
          %v1165 = vlaneseq
          %v1166 = vshrl.u32 %v1165, 7
          %v1167 = vsub.s32 0, %v1166
          %v1168 = vrot.slane %v1163, %v1167
          %v1170 = vadd.f32 %v1157, %v1168
          %v1171 = vadd.f32 %v1158, %v1168
          %v1172 = vadd.f32 %v1159, %v1168
          %v1173 = vadd.f32 %v1160, %v1168
          %1174 = vst.msk [vmem:[%s1156] sm:$0xff] %vm1107, %v1170
          %1175 = vst.msk [vmem:[%s1156 + $0x8] sm:$0xff] %vm1107, %v1171
          %1176 = vst.msk [vmem:[%s1156 + $0x10] sm:$0xff] %vm1107, %v1172
          %1177 = vst.msk [vmem:[%s1156 + $0x18] sm:$0xff] %vm1107, %v1173
        $region60: #{tpu_custom_call.1} parent=35 // pred_fallthru
          _
        %p1178 = scmp.ge.s32.totalorder %s29, 1
        // Predicated region
        $region61: #{tpu_custom_call.1} parent=35 // pred_check
          %p1179 = pneg %p1178
        $region62: #{tpu_custom_call.1} parent=35 // pred_check_branch
          %1181 = sbr.rel (%p1179) target = $region64
        $region63: #{tpu_custom_call.1} parent=35 // pred_region
          %v1182 = vld [vmem:[%s290] sm:$0xf]
          %v1183 = vld [vmem:[%s290 + $0x4] sm:$0xf]
          %v1184 = vld [vmem:[%s290 + $0x8] sm:$0xf]
          %v1185 = vld [vmem:[%s290 + $0xc] sm:$0xf]
          %v1190 = vunpack.c.l.b16 %v1182
          %v1191 = vunpack.c.l.b16 %v1183
          %v1192 = vunpack.c.l.b16 %v1184
          %v1193 = vunpack.c.l.b16 %v1185
          %v1194 = vpack.c.b16 %v1191, %v1190
          %v1195 = vpack.c.b16 %v1193, %v1192
          %v1198 = vunpack.c.l.b16 %v358
          %v1199 = vunpack.c.l.b16 %v359
          %v1200 = vpack.c.b16 %v1199, %v1198
          %vm1202 = vcmask 130048
          %v1204 = vsel %vm1202, %v1194, 0
          %v1207 = vsel %vm1202, %v1195, 0
          %1209 = vmatprep.subr.bf16.mxu0 0
          %1210 = vmatpush1.bf16.msra.mxu0 %v1200
          %1211 = vmatprep.subr.bf16.mxu0 0
          %1212 = vmatpush1.bf16.msra.mxu0 0
          %1213 = vmatprep.subr.bf16.mxu0 0
          %1214 = vmatpush1.bf16.msra.mxu0 0
          %1215 = vmatprep.subr.bf16.mxu0 0
          %1216 = vmatpush1.bf16.msra.mxu0 0
          %1217 = vmatprep.subr.bf16.mxu0 0
          %1218 = vmatpush1.bf16.msra.mxu0 0
          %1219 = vmatprep.subr.bf16.mxu0 0
          %1220 = vmatpush1.bf16.msra.mxu0 0
          %1221 = vmatprep.subr.bf16.mxu0 0
          %1222 = vmatpush1.bf16.msra.mxu0 0
          %1223 = vmatprep.subr.bf16.mxu0 0
          %1224 = vmatpush1.bf16.msra.mxu0 0
          %1225 = vmatprep.subr.bf16.mxu0 0
          %1226 = vmatpush1.bf16.msra.mxu0 0
          %1227 = vmatprep.subr.bf16.mxu0 0
          %1228 = vmatpush1.bf16.msra.mxu0 0
          %1229 = vmatprep.subr.bf16.mxu0 0
          %1230 = vmatpush1.bf16.msra.mxu0 0
          %1231 = vmatprep.subr.bf16.mxu0 0
          %1232 = vmatpush1.bf16.msra.mxu0 0
          %1233 = vmatprep.subr.bf16.mxu0 0
          %1234 = vmatpush1.bf16.msra.mxu0 0
          %1235 = vmatprep.subr.bf16.mxu0 0
          %1236 = vmatpush1.bf16.msra.mxu0 0
          %1237 = vmatprep.subr.bf16.mxu0 0
          %1238 = vmatpush1.bf16.msra.mxu0 0
          %1239 = vmatprep.subr.bf16.mxu0 0
          %1240 = vmatpush1.bf16.msra.mxu0 0
          %1241 = vmatprep.mubr.bf16.mxu0 0
          %1242 = vmatmul.mubr.bf16.gmra.mrb[0].mxu0 %v1204
          %v1243 = vpop.f32.mrb[0].mxu0
          %v1244 = vadd.f32 0.0, %v1243
          %v1245 = vpop.f32.mrb[0].mxu0
          %v1246 = vpop.f32.mrb[0].mxu0
          %v1247 = vadd.f32 0.0, %v1246
          %v1248 = vpop.f32.mrb[0].mxu0
          %1249 = vmatprep.mubr.bf16.mxu0 0
          %1250 = vmatmul.mubr.bf16.gmra.mrb[0].mxu0 %v1207
          %v1251 = vpop.f32.mrb[0].mxu0
          %v1252 = vadd.f32 0.0, %v1251
          %v1253 = vpop.f32.mrb[0].mxu0
          %v1254 = vpop.f32.mrb[0].mxu0
          %v1255 = vadd.f32 0.0, %v1254
          %v1256 = vpop.f32.mrb[0].mxu0
          %1257 = vdwg.mxu0
          %v1258 = vunpack.c.l.bf16 %v1182
          %v1259 = vunpack.c.l.bf16 %v1183
          %v1260 = vunpack.c.l.bf16 %v1184
          %v1261 = vunpack.c.l.bf16 %v1185
          %v1262 = vmul.f32 %v1258, %v1258
          %v1263 = vmul.f32 %v1259, %v1259
          %v1264 = vmul.f32 %v1260, %v1260
          %v1265 = vmul.f32 %v1261, %v1261
          %v1266 = vsel %vm1202, %v1262, 0.0
          %1267 = vadd.xlane.f32.xlu0 %v1266
          %v1268 = vpop.xlane.xlu0 %1267
          %v1269 = vsel %vm1202, %v1263, 0.0
          %1270 = vadd.xlane.f32.xlu0 %v1269
          %v1271 = vpop.xlane.xlu0 %1270
          %v1272 = vsel %vm1202, %v1264, 0.0
          %1273 = vadd.xlane.f32.xlu0 %v1272
          %v1274 = vpop.xlane.xlu0 %1273
          %v1275 = vsel %vm1202, %v1265, 0.0
          %1276 = vadd.xlane.f32.xlu0 %v1275
          %v1277 = vpop.xlane.xlu0 %1276
          %v1278 = vmul.f32 %v1268, 0.125
          %v1279 = vmul.f32 %v1271, 0.125
          %v1280 = vmul.f32 %v1274, 0.125
          %v1281 = vmul.f32 %v1277, 0.125
          %vm1282 = vcmask 261120
          %v1283 = vsel %vm1282, %v1244, -inf
          %1284 = vmax.xlane.f32.xlu0 %v1283
          %v1285 = vpop.xlane.xlu0 %1284
          %v1286 = vsel %vm1282, %v1247, -inf
          %1287 = vmax.xlane.f32.xlu0 %v1286
          %v1288 = vpop.xlane.xlu0 %1287
          %v1289 = vsel %vm1282, %v1252, -inf
          %1290 = vmax.xlane.f32.xlu0 %v1289
          %v1291 = vpop.xlane.xlu0 %1290
          %v1292 = vsel %vm1282, %v1255, -inf
          %1293 = vmax.xlane.f32.xlu0 %v1292
          %v1294 = vpop.xlane.xlu0 %1293
          %v1295 = vadd.f32 %v1278, %v1285
          %v1296 = vadd.f32 %v1279, %v1288
          %v1297 = vadd.f32 %v1280, %v1291
          %v1298 = vadd.f32 %v1281, %v1294
          %v1299 = vsub.f32 %v1244, %v1295
          %v1300 = vsub.f32 %v1247, %v1296
          %v1301 = vsub.f32 %v1252, %v1297
          %v1302 = vsub.f32 %v1255, %v1298
          %v1303 = vmul.f32 %v1299, 1.442695
          %v1304 = vpow.pop %v1303
          %v1305 = vmul.f32 %v1300, 1.442695
          %v1306 = vpow.pop %v1305
          %v1307 = vmul.f32 %v1301, 1.442695
          %v1308 = vpow.pop %v1307
          %v1309 = vmul.f32 %v1302, 1.442695
          %v1310 = vpow.pop %v1309
          %v1311 = vadd.f32 %v1304, 0.0001
          %v1312 = vadd.f32 %v1306, 0.0001
          %v1313 = vadd.f32 %v1308, 0.0001
          %v1314 = vadd.f32 %v1310, 0.0001
          %v1315 = vpack.c.bf16 %v1312, %v1311
          %v1316 = vpack.c.bf16 %v1314, %v1313
          %v1317 = vld [vmem:[#allocation2] sm:$0xff]
          %v1318 = vld [vmem:[#allocation2 + $0x8] sm:$0xff]
          %v1319 = vld [vmem:[#allocation2 + $0x10] sm:$0xff]
          %v1320 = vld [vmem:[#allocation2 + $0x18] sm:$0xff]
          %v1321 = vpack.c.bf16 %v1318, %v1317
          %v1322 = vpack.c.bf16 %v1320, %v1319
          %v1324 = vsel %vm1282, %v1315, 0
          %1326 = vmatprep.subr.bf16.mxu0 0
          %1327 = vmatpush1.bf16.msra.mxu0 %v1321
          %1328 = vmatprep.subr.bf16.mxu0 0
          %1329 = vmatpush1.bf16.msra.mxu0 %v1322
          %1330 = vmatprep.subr.bf16.mxu0 0
          %1331 = vmatpush1.bf16.msra.mxu0 0
          %1332 = vmatprep.subr.bf16.mxu0 0
          %1333 = vmatpush1.bf16.msra.mxu0 0
          %1334 = vmatprep.subr.bf16.mxu0 0
          %1335 = vmatpush1.bf16.msra.mxu0 0
          %1336 = vmatprep.subr.bf16.mxu0 0
          %1337 = vmatpush1.bf16.msra.mxu0 0
          %1338 = vmatprep.subr.bf16.mxu0 0
          %1339 = vmatpush1.bf16.msra.mxu0 0
          %1340 = vmatprep.subr.bf16.mxu0 0
          %1341 = vmatpush1.bf16.msra.mxu0 0
          %1342 = vmatprep.subr.bf16.mxu0 0
          %1343 = vmatpush1.bf16.msra.mxu0 0
          %1344 = vmatprep.subr.bf16.mxu0 0
          %1345 = vmatpush1.bf16.msra.mxu0 0
          %1346 = vmatprep.subr.bf16.mxu0 0
          %1347 = vmatpush1.bf16.msra.mxu0 0
          %1348 = vmatprep.subr.bf16.mxu0 0
          %1349 = vmatpush1.bf16.msra.mxu0 0
          %1350 = vmatprep.subr.bf16.mxu0 0
          %1351 = vmatpush1.bf16.msra.mxu0 0
          %1352 = vmatprep.subr.bf16.mxu0 0
          %1353 = vmatpush1.bf16.msra.mxu0 0
          %1354 = vmatprep.subr.bf16.mxu0 0
          %1355 = vmatpush1.bf16.msra.mxu0 0
          %1356 = vmatprep.subr.bf16.mxu0 0
          %1357 = vmatpush1.bf16.msra.mxu0 0
          %1358 = vmatprep.mubr.bf16.mxu0 0
          %1359 = vmatmul.mubr.bf16.gmra.mrb[0].mxu0 %v1324
          %v1360 = vpop.f32.mrb[0].mxu0
          %v1361 = vadd.f32 0.0, %v1360
          %v1362 = vpop.f32.mrb[0].mxu0
          %v1363 = vpop.f32.mrb[0].mxu0
          %v1364 = vpop.f32.mrb[0].mxu0
          %1365 = vdwg.mxu0
          %v1366 = vrcp.pop %v1361
          %1368 = vset.pattern.permute.xlu0 16
          %1369 = vperm.xlu0 %1368, %v1366
          %v1370 = vpop.permute.xlu0 %1369
          %v1372 = vmul.f32 %v1361, %v1370
          %s1373 = scalar_lea.vmem [#allocation2], 32
          %v1374 = vld [vmem:[%s1373] sm:$0xff]
          %v1375 = vld [vmem:[%s1373 + $0x8] sm:$0xff]
          %v1376 = vld [vmem:[%s1373 + $0x10] sm:$0xff]
          %v1377 = vld [vmem:[%s1373 + $0x18] sm:$0xff]
          %v1378 = vpack.c.bf16 %v1375, %v1374
          %v1379 = vpack.c.bf16 %v1377, %v1376
          %v1381 = vrot.slane %v1315, 4
          %v1383 = vsel %vm1282, %v1381, 0
          %1385 = vmatprep.subr.bf16.mxu0 0
          %1386 = vmatpush1.bf16.msra.mxu0 %v1378
          %1387 = vmatprep.subr.bf16.mxu0 0
          %1388 = vmatpush1.bf16.msra.mxu0 %v1379
          %1389 = vmatprep.subr.bf16.mxu0 0
          %1390 = vmatpush1.bf16.msra.mxu0 0
          %1391 = vmatprep.subr.bf16.mxu0 0
          %1392 = vmatpush1.bf16.msra.mxu0 0
          %1393 = vmatprep.subr.bf16.mxu0 0
          %1394 = vmatpush1.bf16.msra.mxu0 0
          %1395 = vmatprep.subr.bf16.mxu0 0
          %1396 = vmatpush1.bf16.msra.mxu0 0
          %1397 = vmatprep.subr.bf16.mxu0 0
          %1398 = vmatpush1.bf16.msra.mxu0 0
          %1399 = vmatprep.subr.bf16.mxu0 0
          %1400 = vmatpush1.bf16.msra.mxu0 0
          %1401 = vmatprep.subr.bf16.mxu0 0
          %1402 = vmatpush1.bf16.msra.mxu0 0
          %1403 = vmatprep.subr.bf16.mxu0 0
          %1404 = vmatpush1.bf16.msra.mxu0 0
          %1405 = vmatprep.subr.bf16.mxu0 0
          %1406 = vmatpush1.bf16.msra.mxu0 0
          %1407 = vmatprep.subr.bf16.mxu0 0
          %1408 = vmatpush1.bf16.msra.mxu0 0
          %1409 = vmatprep.subr.bf16.mxu0 0
          %1410 = vmatpush1.bf16.msra.mxu0 0
          %1411 = vmatprep.subr.bf16.mxu0 0
          %1412 = vmatpush1.bf16.msra.mxu0 0
          %1413 = vmatprep.subr.bf16.mxu0 0
          %1414 = vmatpush1.bf16.msra.mxu0 0
          %1415 = vmatprep.subr.bf16.mxu0 0
          %1416 = vmatpush1.bf16.msra.mxu0 0
          %1417 = vmatprep.mubr.bf16.mxu0 0
          %1418 = vmatmul.mubr.bf16.gmra.mrb[0].mxu0 %v1383
          %v1419 = vpop.f32.mrb[0].mxu0
          %v1420 = vadd.f32 0.0, %v1419
          %v1421 = vpop.f32.mrb[0].mxu0
          %v1422 = vpop.f32.mrb[0].mxu0
          %v1423 = vpop.f32.mrb[0].mxu0
          %1424 = vdwg.mxu0
          %v1425 = vrcp.pop %v1420
          %1427 = vset.pattern.permute.xlu0 16
          %1428 = vperm.xlu0 %1427, %v1425
          %v1429 = vpop.permute.xlu0 %1428
          %v1431 = vmul.f32 %v1420, %v1429
          %s1432 = scalar_lea.vmem [#allocation2], 64
          %v1433 = vld [vmem:[%s1432] sm:$0xff]
          %v1434 = vld [vmem:[%s1432 + $0x8] sm:$0xff]
          %v1435 = vld [vmem:[%s1432 + $0x10] sm:$0xff]
          %v1436 = vld [vmem:[%s1432 + $0x18] sm:$0xff]
          %v1437 = vpack.c.bf16 %v1434, %v1433
          %v1438 = vpack.c.bf16 %v1436, %v1435
          %v1440 = vsel %vm1282, %v1316, 0
          %1442 = vmatprep.subr.bf16.mxu0 0
          %1443 = vmatpush1.bf16.msra.mxu0 %v1437
          %1444 = vmatprep.subr.bf16.mxu0 0
          %1445 = vmatpush1.bf16.msra.mxu0 %v1438
          %1446 = vmatprep.subr.bf16.mxu0 0
          %1447 = vmatpush1.bf16.msra.mxu0 0
          %1448 = vmatprep.subr.bf16.mxu0 0
          %1449 = vmatpush1.bf16.msra.mxu0 0
          %1450 = vmatprep.subr.bf16.mxu0 0
          %1451 = vmatpush1.bf16.msra.mxu0 0
          %1452 = vmatprep.subr.bf16.mxu0 0
          %1453 = vmatpush1.bf16.msra.mxu0 0
          %1454 = vmatprep.subr.bf16.mxu0 0
          %1455 = vmatpush1.bf16.msra.mxu0 0
          %1456 = vmatprep.subr.bf16.mxu0 0
          %1457 = vmatpush1.bf16.msra.mxu0 0
          %1458 = vmatprep.subr.bf16.mxu0 0
          %1459 = vmatpush1.bf16.msra.mxu0 0
          %1460 = vmatprep.subr.bf16.mxu0 0
          %1461 = vmatpush1.bf16.msra.mxu0 0
          %1462 = vmatprep.subr.bf16.mxu0 0
          %1463 = vmatpush1.bf16.msra.mxu0 0
          %1464 = vmatprep.subr.bf16.mxu0 0
          %1465 = vmatpush1.bf16.msra.mxu0 0
          %1466 = vmatprep.subr.bf16.mxu0 0
          %1467 = vmatpush1.bf16.msra.mxu0 0
          %1468 = vmatprep.subr.bf16.mxu0 0
          %1469 = vmatpush1.bf16.msra.mxu0 0
          %1470 = vmatprep.subr.bf16.mxu0 0
          %1471 = vmatpush1.bf16.msra.mxu0 0
          %1472 = vmatprep.subr.bf16.mxu0 0
          %1473 = vmatpush1.bf16.msra.mxu0 0
          %1474 = vmatprep.mubr.bf16.mxu0 0
          %1475 = vmatmul.mubr.bf16.gmra.mrb[0].mxu0 %v1440
          %v1476 = vpop.f32.mrb[0].mxu0
          %v1477 = vadd.f32 0.0, %v1476
          %v1478 = vpop.f32.mrb[0].mxu0
          %v1479 = vpop.f32.mrb[0].mxu0
          %v1480 = vpop.f32.mrb[0].mxu0
          %1481 = vdwg.mxu0
          %v1482 = vrcp.pop %v1477
          %1484 = vset.pattern.permute.xlu0 16
          %1485 = vperm.xlu0 %1484, %v1482
          %v1486 = vpop.permute.xlu0 %1485
          %v1488 = vmul.f32 %v1477, %v1486
          %s1489 = scalar_lea.vmem [#allocation2], 96
          %v1490 = vld [vmem:[%s1489] sm:$0xff]
          %v1491 = vld [vmem:[%s1489 + $0x8] sm:$0xff]
          %v1492 = vld [vmem:[%s1489 + $0x10] sm:$0xff]
          %v1493 = vld [vmem:[%s1489 + $0x18] sm:$0xff]
          %v1494 = vpack.c.bf16 %v1491, %v1490
          %v1495 = vpack.c.bf16 %v1493, %v1492
          %v1497 = vrot.slane %v1316, 4
          %v1499 = vsel %vm1282, %v1497, 0
          %1501 = vmatprep.subr.bf16.mxu0 0
          %1502 = vmatpush1.bf16.msra.mxu0 %v1494
          %1503 = vmatprep.subr.bf16.mxu0 0
          %1504 = vmatpush1.bf16.msra.mxu0 %v1495
          %1505 = vmatprep.subr.bf16.mxu0 0
          %1506 = vmatpush1.bf16.msra.mxu0 0
          %1507 = vmatprep.subr.bf16.mxu0 0
          %1508 = vmatpush1.bf16.msra.mxu0 0
          %1509 = vmatprep.subr.bf16.mxu0 0
          %1510 = vmatpush1.bf16.msra.mxu0 0
          %1511 = vmatprep.subr.bf16.mxu0 0
          %1512 = vmatpush1.bf16.msra.mxu0 0
          %1513 = vmatprep.subr.bf16.mxu0 0
          %1514 = vmatpush1.bf16.msra.mxu0 0
          %1515 = vmatprep.subr.bf16.mxu0 0
          %1516 = vmatpush1.bf16.msra.mxu0 0
          %1517 = vmatprep.subr.bf16.mxu0 0
          %1518 = vmatpush1.bf16.msra.mxu0 0
          %1519 = vmatprep.subr.bf16.mxu0 0
          %1520 = vmatpush1.bf16.msra.mxu0 0
          %1521 = vmatprep.subr.bf16.mxu0 0
          %1522 = vmatpush1.bf16.msra.mxu0 0
          %1523 = vmatprep.subr.bf16.mxu0 0
          %1524 = vmatpush1.bf16.msra.mxu0 0
          %1525 = vmatprep.subr.bf16.mxu0 0
          %1526 = vmatpush1.bf16.msra.mxu0 0
          %1527 = vmatprep.subr.bf16.mxu0 0
          %1528 = vmatpush1.bf16.msra.mxu0 0
          %1529 = vmatprep.subr.bf16.mxu0 0
          %1530 = vmatpush1.bf16.msra.mxu0 0
          %1531 = vmatprep.subr.bf16.mxu0 0
          %1532 = vmatpush1.bf16.msra.mxu0 0
          %1533 = vmatprep.mubr.bf16.mxu0 0
          %1534 = vmatmul.mubr.bf16.gmra.mrb[0].mxu0 %v1499
          %v1535 = vpop.f32.mrb[0].mxu0
          %v1536 = vadd.f32 0.0, %v1535
          %v1537 = vpop.f32.mrb[0].mxu0
          %v1538 = vpop.f32.mrb[0].mxu0
          %v1539 = vpop.f32.mrb[0].mxu0
          %1540 = vdwg.mxu0
          %v1541 = vrcp.pop %v1536
          %1543 = vset.pattern.permute.xlu0 16
          %1544 = vperm.xlu0 %1543, %v1541
          %v1545 = vpop.permute.xlu0 %1544
          %v1547 = vmul.f32 %v1536, %v1545
          %1549 = vrot.lane.b32.xlu0 %v1431, 16
          %v1550 = vpop.permute.xlu0 %1549
          %1553 = vrot.lane.b32.xlu0 %v1488, 32
          %v1554 = vpop.permute.xlu0 %1553
          %1557 = vrot.lane.b32.xlu0 %v1547, 48
          %v1558 = vpop.permute.xlu0 %1557
          %v1560 = vsel %vm1202, %v1372, %v1550
          %v1561 = vsel %vm1282, %v1560, %v1554
          %vm1562 = vcmask 392192
          %v1563 = vsel %vm1562, %v1561, %v1558
          %v1564 = vpack.c.bf16 %v1563, %v1563
          %vm1565 = vcmask 519168
          %1566 = vst.msk [vmem:[%s342] sm:$0xf] %vm1565, %v1564
        $region64: #{tpu_custom_call.1} parent=35 // pred_fallthru
          _
        %s1567 = sand.u32 %s171, 1
        %s1568 = scalar_lea.sflag [#allocation7], %s1567
        %s1569 = sand.u32 %s171, 1
        %s1570 = smul.addr %s1569, 4
        %s1571 = scalar_lea.vmem [#allocation11], %s1570
        // Predicated region
        $region65: #{tpu_custom_call.1} parent=35 // pred_check
          %p1572 = pneg %p181
        $region66: #{tpu_custom_call.1} parent=35 // pred_check_branch
          %1574 = sbr.rel (%p1572) target = $region68
        $region67: #{tpu_custom_call.1} parent=35 // pred_region
          %s1575 = ssub.s32 %s29, 1
          %p1576 = scmp.gt.s32.totalorder %s1575, 0
          %s1577 = scalar_select %p1576, %s1575, 0
          %s1579 = ssub.s32 64, 64
          %1580 = vsyncadd %s1568, %s1579
          %s1581 = sadd.s32 %s1577, %s28
          %s1582 = smul.addr %s1581, 64
          %s1583 = scalar_lea.hbm %s4, %s1582
          %s1585 = sshll.u32 %s1571, 4
          %s1586 = int_to_ptr.vmem [resolvable:$true] %s1585
          %1588 = dma.vmem_to_hbm [thread:$0]  %s1586, 64, %s1583, %s1568
        $region68: #{tpu_custom_call.1} parent=35 // pred_fallthru
          _
      $region36: #{tpu_custom_call.1} parent=5 // pred_fallthru
        _
      %p1589 = scmp.le.s32.totalorder 2, %s19
      // Predicated region
      $region69: #{tpu_custom_call.1} parent=5 // pred_check
        %p1590 = pneg %p1589
      $region70: #{tpu_custom_call.1} parent=5 // pred_check_branch
        %1592 = sbr.rel (%p1590) target = $region72
      $region71: #{tpu_custom_call.1} parent=5 // pred_region
        %s1593 = ssub.s32 %s19, 2
        // Predicated region
        $region73: #{tpu_custom_call.1} parent=71 // pred_check
          %p1594 = pneg %p187
        $region74: #{tpu_custom_call.1} parent=71 // pred_check_branch
          %1596 = sbr.rel (%p1594) target = $region76
        $region75: #{tpu_custom_call.1} parent=71 // pred_region
          %s1597 = sand.u32 %s172, 1
          %s1598 = scalar_lea.sflag [#allocation7], %s1597
          %s1599 = sand.u32 %s172, 1
          %s1600 = smul.addr %s1599, 4
          %s1601 = scalar_lea.vmem [#allocation11], %s1600
          %1602 = dma.done %s1598, 64
        $region76: #{tpu_custom_call.1} parent=71 // pred_fallthru
          _
      $region72: #{tpu_custom_call.1} parent=5 // pred_fallthru
        _
    $region6: #{tpu_custom_call.1} parent=1 // loop_footer
      %s23 = sadd.s32 1, %s19
    $region7: #{tpu_custom_call.1} parent=1 // loop_footer_branch
      %18 = sbr.rel target = $region3
    $region8: #{tpu_custom_call.1} parent=1 // loop_exit
      _
    %1603 = vsyncpa [#allocation6], 1
    %s1604 = scalar_lea.sflag [#allocation6], 1
    %1605 = vsyncpa %s1604, 1
    %1606 = vsyncpa [#allocation9], 1
    %s1607 = scalar_lea.sflag [#allocation9], 1
    %1608 = vsyncpa %s1607, 1
    %1609 = vsyncpa [#allocation7], 1
    %s1610 = scalar_lea.sflag [#allocation7], 1
    %1611 = vsyncpa %s1610, 1

</llo_original>
